<compile_context>
chip_gen: v5e
topology: v5e:2x2
jax: 0.10.0
libtpu: 0.0.40
codegen_flags: <defaults>
</compile_context>

<pallas_src>
import functools

import jax
import jax.numpy as jnp
from jax.experimental import pallas as pl
from jax.experimental.pallas import tpu as pltpu


# ----------------------------------------------------------------------------
# Kernel: the whole MLP is fused; one invocation per row tile.
# Ref order: (x, w0, b0, [w_i, b_i] * (num_layers-1), w_out, b_out, o)
#   x:     (d_in, tile_rows)   packed [t; xy], rows on lanes
#   w_i:   (out, in)           PyTorch nn.Linear layout
#   b_i:   (out, 1)
#   o:     (dim_out, tile_rows)
# ----------------------------------------------------------------------------
def mlp_kernel(x_ref, *refs, num_layers, chunk):
    w0_ref, b0_ref = refs[0], refs[1]
    hidden_refs = refs[2:2 + 2 * (num_layers - 1)]
    wout_ref, bout_ref, o_ref = refs[-3:]

    f32 = jnp.float32
    d_in = x_ref.shape[0]
    tile_rows = x_ref.shape[1]
    n_chunks = tile_rows // chunk

    # Tiny weights: load once per tile, stay resident.
    w0 = w0_ref[...]                                   # (H, d_in)
    b0 = b0_ref[...]                                   # (H, 1)
    ws = [hidden_refs[2 * i][...] for i in range(num_layers - 1)]      # (H, H)
    bs = [hidden_refs[2 * i + 1][...] for i in range(num_layers - 1)]  # (H, 1)
    w_out = wout_ref[...]                              # (dim_out, H)
    b_out = bout_ref[...]                              # (dim_out, 1)

    # Static lane-chunks: activation (H, chunk) stays register/VMEM-resident
    # through all layers; static slices have zero runtime cost.
    for c in range(n_chunks):
        lo, hi = c * chunk, (c + 1) * chunk
        x = x_ref[:, lo:hi]                            # (d_in, chunk)

        # ---- layer 0: h = relu(W0 @ x + b0) via d_in broadcast MACs ----------
        # (H,1) column lane-broadcast x (1,chunk) row sublane-broadcast.
        h = w0[:, 0:1] * x[0:1, :]
        for k in range(1, d_in):
            h = h + w0[:, k:k + 1] * x[k:k + 1, :]
        h = jnp.maximum(h + b0, 0.0)                   # (H, chunk)

        # ---- remaining hidden layers on the MXU: (H,H) @ (H,chunk) -----------
        for i in range(num_layers - 1):
            h = jax.lax.dot_general(ws[i], h, (((1,), (0,)), ((), ())),
                                    preferred_element_type=f32)
            h = jnp.maximum(h + bs[i], 0.0)

        # ---- final layer (no activation), already transposed ------------------
        out = jax.lax.dot_general(w_out, h, (((1,), (0,)), ((), ())),
                                  preferred_element_type=f32) + b_out
        o_ref[:, lo:hi] = out.astype(o_ref.dtype)      # (dim_out, chunk), lane-dense


# ----------------------------------------------------------------------------
# Wrapper
# ----------------------------------------------------------------------------
def mlp_sirenlike_forward(t, xy, params, *, dim_out, tile_rows=4096, chunk=512):
    """params: list of (W, b) with W: (out_features, in_features) (PyTorch layout),
    b: (out_features,).  Returns (n, dim_out)."""
    assert tile_rows % 128 == 0, "tile_rows must be a multiple of 128"
    assert chunk % 128 == 0 and tile_rows % chunk == 0, \
        "chunk must be a multiple of 128 dividing tile_rows"
    n, d_t = t.shape
    n2, d_xy = xy.shape
    assert n == n2
    d_in = d_t + d_xy
    num_layers = len(params) - 1                 # hidden Linear+ReLU layers
    H = params[0][0].shape[0]
    assert params[0][0].shape == (H, d_in), \
        "first layer weight must be (dim_hidden, d_t + d_xy)"
    assert params[-1][0].shape == (dim_out, H)

    n_tiles = pl.cdiv(n, tile_rows)
    n_pad = n_tiles * tile_rows

    # Pack + transpose inputs host-side: (d_in, n_pad), rows on lanes.
    x = jnp.concatenate([t, xy], axis=-1).T      # (d_in, n)
    if n_pad != n:
        x = jnp.pad(x, ((0, 0), (0, n_pad - n)))

    inputs = [x]
    in_specs = [pl.BlockSpec((d_in, tile_rows), lambda i: (0, i))]
    # All Linear layers but the last: weights/biases grid-invariant -> resident.
    for (w, b) in params[:-1]:
        inputs += [w, b.reshape(-1, 1)]
        in_specs += [pl.BlockSpec(w.shape, lambda i: (0, 0)),
                     pl.BlockSpec((w.shape[0], 1), lambda i: (0, 0))]
    w_last, b_last = params[-1]
    inputs += [w_last, b_last.reshape(dim_out, 1)]
    in_specs += [pl.BlockSpec((dim_out, H), lambda i: (0, 0)),
                 pl.BlockSpec((dim_out, 1), lambda i: (0, 0))]

    out_t = pl.pallas_call(
        functools.partial(mlp_kernel, num_layers=num_layers, chunk=chunk),
        out_shape=jax.ShapeDtypeStruct((dim_out, n_pad), t.dtype),
        grid_spec=pl.GridSpec(
            grid=(n_tiles,),
            in_specs=in_specs,
            out_specs=pl.BlockSpec((dim_out, tile_rows), lambda i: (0, i)),
        ),
        compiler_params=pltpu.CompilerParams(
            dimension_semantics=("parallel",)),
    )(*inputs)

    # (dim_out, n_pad) -> (n, dim_out); free reshape when dim_out == 1.
    # TODO(synk): for dim_out > 1 consider returning (dim_out, n) so the caller
    # can fuse the transpose instead of paying an extra HBM pass here.
    return out_t[:, :n].T


# ----------------------------------------------------------------------------
# Deterministic parameter init (PyTorch nn.Linear default: U(-k, k), k=1/sqrt(fan_in))
# Weights in PyTorch (out_features, in_features) layout.
# ----------------------------------------------------------------------------
def init_params(key, num_layers, dim_hidden, dim_in, dim_out):
    layer_dims = []
    for i in range(num_layers):
        d_in = dim_in if i == 0 else dim_hidden
        layer_dims.append((dim_hidden, d_in))
    layer_dims.append((dim_out, dim_hidden))

    params = []
    for (d_out, d_in) in layer_dims:
        key, kw, kb = jax.random.split(key, 3)
        bound = 1.0 / jnp.sqrt(jnp.float32(d_in))
        w = jax.random.uniform(kw, (d_out, d_in), jnp.float32, -bound, bound)
        b = jax.random.uniform(kb, (d_out,), jnp.float32, -bound, bound)
        params.append((w, b))
    return params


def mlp_reference(t, xy, params):
    h = jnp.concatenate([t, xy], axis=-1)
    n = len(params)
    for i, (w, b) in enumerate(params):
        h = h @ w.T + b
        if i < n - 1:
            h = jnp.maximum(h, 0.0)
    return h


if __name__ == "__main__":
    # t has 1 feature, xy has 2 features -> dim_in = 3; 3 hidden layers of
    # width 32; scalar output.  n_points deliberately NOT a tile multiple so
    # the padding path is exercised; tile_rows=1024 gives a multi-step grid
    # (n_tiles >= 2, so both v7x TensorCores get work); chunk=512 exercises
    # the in-kernel lane chunking.
    num_layers = 3
    dim_hidden = 32
    dim_in = 3
    dim_out = 1
    n_points = 3000

    key = jax.random.PRNGKey(0)
    k_t, k_xy, k_p = jax.random.split(key, 3)
    t = jax.random.normal(k_t, (n_points, 1), jnp.float32)
    xy = jax.random.normal(k_xy, (n_points, 2), jnp.float32)
    params = init_params(k_p, num_layers, dim_hidden, dim_in, dim_out)

    out = mlp_sirenlike_forward(t, xy, params, dim_out=dim_out,
                                tile_rows=1024, chunk=512)
    out = jax.block_until_ready(out)

    ref = mlp_reference(t, xy, params)
    assert out.shape == (n_points, dim_out)
    # Tolerance covers TPU default matmul-precision / summation-order
    # differences between the fused kernel and the XLA reference.
    assert jnp.allclose(out, ref, rtol=1e-3, atol=1e-3), "mismatch vs reference"

    print("KERNEL_OK")
</pallas_src>

<mosaic_0001>
module attributes {stable_mosaic.version = 11 : i64} {
  func.func @mlp_kernel(%arg0: i32, %arg1: memref<3x1024xf32, #tpu.memory_space<vmem>>, %arg2: memref<32x3xf32, #tpu.memory_space<vmem>>, %arg3: memref<32x1xf32, #tpu.memory_space<vmem>>, %arg4: memref<32x32xf32, #tpu.memory_space<vmem>>, %arg5: memref<32x1xf32, #tpu.memory_space<vmem>>, %arg6: memref<32x32xf32, #tpu.memory_space<vmem>>, %arg7: memref<32x1xf32, #tpu.memory_space<vmem>>, %arg8: memref<1x32xf32, #tpu.memory_space<vmem>>, %arg9: memref<1x1xf32, #tpu.memory_space<vmem>>, %arg10: memref<1x1024xf32, #tpu.memory_space<vmem>>) attributes {dimension_semantics = [#tpu.dimension_semantics<parallel>], iteration_bounds = array<i64: 3>, scalar_prefetch = 0 : i64, scratch_operands = 0 : i64, tpu.core_type = #tpu.core_type<tc>, window_params = [{transform_indices = @transform_0, window_bounds = array<i64: 3, 1024>}, {pipeline_mode = #tpu.pipeline_mode<synchronous>, transform_indices = @transform_1, window_bounds = array<i64: 32, 3>}, {pipeline_mode = #tpu.pipeline_mode<synchronous>, transform_indices = @transform_2, window_bounds = array<i64: 32, 1>}, {pipeline_mode = #tpu.pipeline_mode<synchronous>, transform_indices = @transform_3, window_bounds = array<i64: 32, 32>}, {pipeline_mode = #tpu.pipeline_mode<synchronous>, transform_indices = @transform_4, window_bounds = array<i64: 32, 1>}, {pipeline_mode = #tpu.pipeline_mode<synchronous>, transform_indices = @transform_5, window_bounds = array<i64: 32, 32>}, {pipeline_mode = #tpu.pipeline_mode<synchronous>, transform_indices = @transform_6, window_bounds = array<i64: 32, 1>}, {pipeline_mode = #tpu.pipeline_mode<synchronous>, transform_indices = @transform_7, window_bounds = array<i64: 1, 32>}, {pipeline_mode = #tpu.pipeline_mode<synchronous>, transform_indices = @transform_8, window_bounds = array<i64: 1, 1>}, {transform_indices = @transform_9, window_bounds = array<i64: 1, 1024>}]} {
    %c0 = arith.constant 0 : index
    %c0_0 = arith.constant 0 : index
    %0 = vector.load %arg2[%c0, %c0_0] : memref<32x3xf32, #tpu.memory_space<vmem>>, vector<32x3xf32>
    %c0_1 = arith.constant 0 : index
    %c0_2 = arith.constant 0 : index
    %1 = vector.load %arg3[%c0_1, %c0_2] : memref<32x1xf32, #tpu.memory_space<vmem>>, vector<32x1xf32>
    %c0_3 = arith.constant 0 : index
    %c0_4 = arith.constant 0 : index
    %2 = vector.load %arg4[%c0_3, %c0_4] : memref<32x32xf32, #tpu.memory_space<vmem>>, vector<32x32xf32>
    %c0_5 = arith.constant 0 : index
    %c0_6 = arith.constant 0 : index
    %3 = vector.load %arg6[%c0_5, %c0_6] : memref<32x32xf32, #tpu.memory_space<vmem>>, vector<32x32xf32>
    %c0_7 = arith.constant 0 : index
    %c0_8 = arith.constant 0 : index
    %4 = vector.load %arg5[%c0_7, %c0_8] : memref<32x1xf32, #tpu.memory_space<vmem>>, vector<32x1xf32>
    %c0_9 = arith.constant 0 : index
    %c0_10 = arith.constant 0 : index
    %5 = vector.load %arg7[%c0_9, %c0_10] : memref<32x1xf32, #tpu.memory_space<vmem>>, vector<32x1xf32>
    %c0_11 = arith.constant 0 : index
    %c0_12 = arith.constant 0 : index
    %6 = vector.load %arg8[%c0_11, %c0_12] : memref<1x32xf32, #tpu.memory_space<vmem>>, vector<1x32xf32>
    %c0_13 = arith.constant 0 : index
    %c0_14 = arith.constant 0 : index
    %7 = vector.load %arg9[%c0_13, %c0_14] : memref<1x1xf32, #tpu.memory_space<vmem>>, vector<1x1xf32>
    %c0_15 = arith.constant 0 : index
    %c0_16 = arith.constant 0 : index
    %8 = vector.load %arg1[%c0_15, %c0_16] : memref<3x1024xf32, #tpu.memory_space<vmem>>, vector<3x512xf32>
    %9 = vector.extract_strided_slice %0 {offsets = [0, 0], sizes = [32, 1], strides = [1, 1]} : vector<32x3xf32> to vector<32x1xf32>
    %10 = vector.extract_strided_slice %8 {offsets = [0, 0], sizes = [1, 512], strides = [1, 1]} : vector<3x512xf32> to vector<1x512xf32>
    %11 = vector.broadcast %9 : vector<32x1xf32> to vector<32x512xf32>
    %12 = vector.broadcast %10 : vector<1x512xf32> to vector<32x512xf32>
    %13 = arith.mulf %11, %12 : vector<32x512xf32>
    %14 = vector.extract_strided_slice %0 {offsets = [0, 1], sizes = [32, 1], strides = [1, 1]} : vector<32x3xf32> to vector<32x1xf32>
    %15 = vector.extract_strided_slice %8 {offsets = [1, 0], sizes = [1, 512], strides = [1, 1]} : vector<3x512xf32> to vector<1x512xf32>
    %16 = vector.broadcast %14 : vector<32x1xf32> to vector<32x512xf32>
    %17 = vector.broadcast %15 : vector<1x512xf32> to vector<32x512xf32>
    %18 = arith.mulf %16, %17 : vector<32x512xf32>
    %19 = arith.addf %13, %18 : vector<32x512xf32>
    %20 = vector.extract_strided_slice %0 {offsets = [0, 2], sizes = [32, 1], strides = [1, 1]} : vector<32x3xf32> to vector<32x1xf32>
    %21 = vector.extract_strided_slice %8 {offsets = [2, 0], sizes = [1, 512], strides = [1, 1]} : vector<3x512xf32> to vector<1x512xf32>
    %22 = vector.broadcast %20 : vector<32x1xf32> to vector<32x512xf32>
    %23 = vector.broadcast %21 : vector<1x512xf32> to vector<32x512xf32>
    %24 = arith.mulf %22, %23 : vector<32x512xf32>
    %25 = arith.addf %19, %24 : vector<32x512xf32>
    %26 = vector.broadcast %1 : vector<32x1xf32> to vector<32x512xf32>
    %27 = arith.addf %25, %26 : vector<32x512xf32>
    %cst = arith.constant 0.000000e+00 : f32
    %28 = vector.broadcast %cst : f32 to vector<32x512xf32>
    %29 = arith.maximumf %27, %28 : vector<32x512xf32>
    %cst_17 = arith.constant dense<0.000000e+00> : vector<32x512xf32>
    %30 = tpu.matmul %2, %29, %cst_17 {dimension_numbers = #tpu.dot_dimension_numbers<[1], [0], [0], [1], [0, 0, 1, 1], [], []>} : vector<32x32xf32>, vector<32x512xf32>, vector<32x512xf32> -> vector<32x512xf32>
    %31 = vector.broadcast %4 : vector<32x1xf32> to vector<32x512xf32>
    %32 = arith.addf %30, %31 : vector<32x512xf32>
    %cst_18 = arith.constant 0.000000e+00 : f32
    %33 = vector.broadcast %cst_18 : f32 to vector<32x512xf32>
    %34 = arith.maximumf %32, %33 : vector<32x512xf32>
    %cst_19 = arith.constant dense<0.000000e+00> : vector<32x512xf32>
    %35 = tpu.matmul %3, %34, %cst_19 {dimension_numbers = #tpu.dot_dimension_numbers<[1], [0], [0], [1], [0, 0, 1, 1], [], []>} : vector<32x32xf32>, vector<32x512xf32>, vector<32x512xf32> -> vector<32x512xf32>
    %36 = vector.broadcast %5 : vector<32x1xf32> to vector<32x512xf32>
    %37 = arith.addf %35, %36 : vector<32x512xf32>
    %cst_20 = arith.constant 0.000000e+00 : f32
    %38 = vector.broadcast %cst_20 : f32 to vector<32x512xf32>
    %39 = arith.maximumf %37, %38 : vector<32x512xf32>
    %cst_21 = arith.constant dense<0.000000e+00> : vector<1x512xf32>
    %40 = tpu.matmul %6, %39, %cst_21 {dimension_numbers = #tpu.dot_dimension_numbers<[1], [0], [0], [1], [0, 0, 1, 1], [], []>} : vector<1x32xf32>, vector<32x512xf32>, vector<1x512xf32> -> vector<1x512xf32>
    %41 = vector.broadcast %7 : vector<1x1xf32> to vector<1x512xf32>
    %42 = arith.addf %40, %41 : vector<1x512xf32>
    %c0_22 = arith.constant 0 : index
    %c0_23 = arith.constant 0 : index
    %43 = vector.load %arg10[%c0_22, %c0_23] : memref<1x1024xf32, #tpu.memory_space<vmem>>, vector<1x512xf32>
    tpu.vector_store %arg10[%c0_22, %c0_23], %42 {strides = array<i32>} : memref<1x1024xf32, #tpu.memory_space<vmem>>, vector<1x512xf32>,
    %c0_24 = arith.constant 0 : index
    %c512 = arith.constant 512 : index
    %44 = vector.load %arg1[%c0_24, %c512] : memref<3x1024xf32, #tpu.memory_space<vmem>>, vector<3x512xf32>
    %45 = vector.extract_strided_slice %0 {offsets = [0, 0], sizes = [32, 1], strides = [1, 1]} : vector<32x3xf32> to vector<32x1xf32>
    %46 = vector.extract_strided_slice %44 {offsets = [0, 0], sizes = [1, 512], strides = [1, 1]} : vector<3x512xf32> to vector<1x512xf32>
    %47 = vector.broadcast %45 : vector<32x1xf32> to vector<32x512xf32>
    %48 = vector.broadcast %46 : vector<1x512xf32> to vector<32x512xf32>
    %49 = arith.mulf %47, %48 : vector<32x512xf32>
    %50 = vector.extract_strided_slice %0 {offsets = [0, 1], sizes = [32, 1], strides = [1, 1]} : vector<32x3xf32> to vector<32x1xf32>
    %51 = vector.extract_strided_slice %44 {offsets = [1, 0], sizes = [1, 512], strides = [1, 1]} : vector<3x512xf32> to vector<1x512xf32>
    %52 = vector.broadcast %50 : vector<32x1xf32> to vector<32x512xf32>
    %53 = vector.broadcast %51 : vector<1x512xf32> to vector<32x512xf32>
    %54 = arith.mulf %52, %53 : vector<32x512xf32>
    %55 = arith.addf %49, %54 : vector<32x512xf32>
    %56 = vector.extract_strided_slice %0 {offsets = [0, 2], sizes = [32, 1], strides = [1, 1]} : vector<32x3xf32> to vector<32x1xf32>
    %57 = vector.extract_strided_slice %44 {offsets = [2, 0], sizes = [1, 512], strides = [1, 1]} : vector<3x512xf32> to vector<1x512xf32>
    %58 = vector.broadcast %56 : vector<32x1xf32> to vector<32x512xf32>
    %59 = vector.broadcast %57 : vector<1x512xf32> to vector<32x512xf32>
    %60 = arith.mulf %58, %59 : vector<32x512xf32>
    %61 = arith.addf %55, %60 : vector<32x512xf32>
    %62 = vector.broadcast %1 : vector<32x1xf32> to vector<32x512xf32>
    %63 = arith.addf %61, %62 : vector<32x512xf32>
    %cst_25 = arith.constant 0.000000e+00 : f32
    %64 = vector.broadcast %cst_25 : f32 to vector<32x512xf32>
    %65 = arith.maximumf %63, %64 : vector<32x512xf32>
    %cst_26 = arith.constant dense<0.000000e+00> : vector<32x512xf32>
    %66 = tpu.matmul %2, %65, %cst_26 {dimension_numbers = #tpu.dot_dimension_numbers<[1], [0], [0], [1], [0, 0, 1, 1], [], []>} : vector<32x32xf32>, vector<32x512xf32>, vector<32x512xf32> -> vector<32x512xf32>
    %67 = vector.broadcast %4 : vector<32x1xf32> to vector<32x512xf32>
    %68 = arith.addf %66, %67 : vector<32x512xf32>
    %cst_27 = arith.constant 0.000000e+00 : f32
    %69 = vector.broadcast %cst_27 : f32 to vector<32x512xf32>
    %70 = arith.maximumf %68, %69 : vector<32x512xf32>
    %cst_28 = arith.constant dense<0.000000e+00> : vector<32x512xf32>
    %71 = tpu.matmul %3, %70, %cst_28 {dimension_numbers = #tpu.dot_dimension_numbers<[1], [0], [0], [1], [0, 0, 1, 1], [], []>} : vector<32x32xf32>, vector<32x512xf32>, vector<32x512xf32> -> vector<32x512xf32>
    %72 = vector.broadcast %5 : vector<32x1xf32> to vector<32x512xf32>
    %73 = arith.addf %71, %72 : vector<32x512xf32>
    %cst_29 = arith.constant 0.000000e+00 : f32
    %74 = vector.broadcast %cst_29 : f32 to vector<32x512xf32>
    %75 = arith.maximumf %73, %74 : vector<32x512xf32>
    %cst_30 = arith.constant dense<0.000000e+00> : vector<1x512xf32>
    %76 = tpu.matmul %6, %75, %cst_30 {dimension_numbers = #tpu.dot_dimension_numbers<[1], [0], [0], [1], [0, 0, 1, 1], [], []>} : vector<1x32xf32>, vector<32x512xf32>, vector<1x512xf32> -> vector<1x512xf32>
    %77 = vector.broadcast %7 : vector<1x1xf32> to vector<1x512xf32>
    %78 = arith.addf %76, %77 : vector<1x512xf32>
    %c0_31 = arith.constant 0 : index
    %c512_32 = arith.constant 512 : index
    %79 = vector.load %arg10[%c0_31, %c512_32] : memref<1x1024xf32, #tpu.memory_space<vmem>>, vector<1x512xf32>
    tpu.vector_store %arg10[%c0_31, %c512_32], %78 {strides = array<i32>} : memref<1x1024xf32, #tpu.memory_space<vmem>>, vector<1x512xf32>,
    return
  }
  func.func @transform_0(%arg0: i32) -> (i32, i32) {
    %c0_i32 = arith.constant 0 : i32
    %c0_i32_0 = arith.constant 0 : i32
    return %c0_i32, %arg0 : i32, i32
  }
  func.func @transform_1(%arg0: i32) -> (i32, i32) {
    %c0_i32 = arith.constant 0 : i32
    %c0_i32_0 = arith.constant 0 : i32
    %c0_i32_1 = arith.constant 0 : i32
    return %c0_i32, %c0_i32_0 : i32, i32
  }
  func.func @transform_2(%arg0: i32) -> (i32, i32) {
    %c0_i32 = arith.constant 0 : i32
    %c0_i32_0 = arith.constant 0 : i32
    %c0_i32_1 = arith.constant 0 : i32
    return %c0_i32, %c0_i32_0 : i32, i32
  }
  func.func @transform_3(%arg0: i32) -> (i32, i32) {
    %c0_i32 = arith.constant 0 : i32
    %c0_i32_0 = arith.constant 0 : i32
    %c0_i32_1 = arith.constant 0 : i32
    return %c0_i32, %c0_i32_0 : i32, i32
  }
  func.func @transform_4(%arg0: i32) -> (i32, i32) {
    %c0_i32 = arith.constant 0 : i32
    %c0_i32_0 = arith.constant 0 : i32
    %c0_i32_1 = arith.constant 0 : i32
    return %c0_i32, %c0_i32_0 : i32, i32
  }
  func.func @transform_5(%arg0: i32) -> (i32, i32) {
    %c0_i32 = arith.constant 0 : i32
    %c0_i32_0 = arith.constant 0 : i32
    %c0_i32_1 = arith.constant 0 : i32
    return %c0_i32, %c0_i32_0 : i32, i32
  }
  func.func @transform_6(%arg0: i32) -> (i32, i32) {
    %c0_i32 = arith.constant 0 : i32
    %c0_i32_0 = arith.constant 0 : i32
    %c0_i32_1 = arith.constant 0 : i32
    return %c0_i32, %c0_i32_0 : i32, i32
  }
  func.func @transform_7(%arg0: i32) -> (i32, i32) {
    %c0_i32 = arith.constant 0 : i32
    %c0_i32_0 = arith.constant 0 : i32
    %c0_i32_1 = arith.constant 0 : i32
    return %c0_i32, %c0_i32_0 : i32, i32
  }
  func.func @transform_8(%arg0: i32) -> (i32, i32) {
    %c0_i32 = arith.constant 0 : i32
    %c0_i32_0 = arith.constant 0 : i32
    %c0_i32_1 = arith.constant 0 : i32
    return %c0_i32, %c0_i32_0 : i32, i32
  }
  func.func @transform_9(%arg0: i32) -> (i32, i32) {
    %c0_i32 = arith.constant 0 : i32
    %c0_i32_0 = arith.constant 0 : i32
    return %c0_i32, %arg0 : i32, i32
  }
}

</mosaic_0001>

<llo_original>
// kernel: tpu_custom_call.1
$region0: #{tpu_custom_call.1}
  #allocation0 [shape = 'u32[]', space=smem, size = 0x4, offset = 0x4, fixed_abs, tag = 'smem constant byte address 0x4 - core index']
  #allocation1 [shape = 'u32[72,128]{1,0:T(1,128)}', space=vmem, size = 0x9000, scoped, tag = 'internal scratch']
  #allocation2 [shape = 'f32[1,1]{1,0:T(1,128)S(1)}', space=vmem, size = 0x200, scoped, tag = 'scoped memory for tpu_custom_call.1']
  %s0 = inlined_call_operand.hbm [shape: f32[3,3072], index: 0, kind: input, shape index: {}]
  %s1 = inlined_call_operand.vmem [shape: f32[32,3], index: 1, kind: input, shape index: {}]
  %s2 = inlined_call_operand.vmem [shape: f32[32,1], index: 2, kind: input, shape index: {}]
  %s3 = inlined_call_operand.vmem [shape: f32[32,32], index: 3, kind: input, shape index: {}]
  %s4 = inlined_call_operand.vmem [shape: f32[32,1], index: 4, kind: input, shape index: {}]
  %s5 = inlined_call_operand.vmem [shape: f32[32,32], index: 5, kind: input, shape index: {}]
  %s6 = inlined_call_operand.vmem [shape: f32[32,1], index: 6, kind: input, shape index: {}]
  %s7 = inlined_call_operand.vmem [shape: f32[1,32], index: 7, kind: input, shape index: {}]
  %s8 = inlined_call_operand.<no memory space> [shape: f32[1,1], index: 8, kind: input, shape index: {}]
  %s9 = inlined_call_operand.hbm [shape: f32[1,3072], index: 9, kind: output, shape index: {}]
  %s10 = sld [smem:[#allocation0]]
  $region73: #{tpu_custom_call.1} parent=0
    _
  %s12 = ssub.s32 1, %s10
  %s13 = scalar_select 0, %s12, %s10
  %v14 = vstv %s8
  %15 = vst [vmem:[#allocation2] sm:$0x1] %v14
  $region1: #{tpu_custom_call.1} parent=0
    #allocation3 [shape = 'u8[32768]{0}', space=vmem, size = 0x8000, scoped, tag = 'input window, operand 0']
    #allocation4 [shape = 's32[2]{0}', space=sflag, size = 0x8, scoped, tag = 'scoped memory for tpu_custom_call.1']
    #allocation5 [shape = 's32[2]{0}', space=sflag, size = 0x8, scoped, tag = 'scoped memory for tpu_custom_call.1']
    #allocation6 [shape = 'u8[8192]{0}', space=vmem, size = 0x2000, scoped, tag = 'output window, operand 0']
    %16 = vsyncpa [#allocation4], 0
    %s17 = scalar_lea.sflag [#allocation4], 1
    %18 = vsyncpa %s17, 0
    %19 = vsyncpa [#allocation5], 0
    %s20 = scalar_lea.sflag [#allocation5], 1
    %21 = vsyncpa %s20, 0
    loop: start=0, step=1, limit=5
    $region2: #{tpu_custom_call.1} parent=1 // loop_pre_header
      _
    $region3: #{tpu_custom_call.1} parent=1 // loop_header
      %s23 = sphi 0, %s27
      %p24 = scmp.ge.s32.totalorder %s23, 5
      %s33 = sphi 0, %s35
      %s36 = sphi 0, %s33
      %s37 = sphi 0, %s36
      %s53 = sphi 0, %s37
      %s57 = sphi 0, %s57
      %s59 = sphi 0, %s57
      %s60 = sphi 0, %s59
      %s74 = sphi 0, %s60
      %s78 = sphi 0, %s78
      %s80 = sphi 0, %s78
      %s81 = sphi 0, %s80
      %s95 = sphi 0, %s81
      %s99 = sphi 0, %s99
      %s101 = sphi 0, %s99
      %s102 = sphi 0, %s101
      %s116 = sphi 0, %s102
      %s120 = sphi 0, %s120
      %s122 = sphi 0, %s120
      %s123 = sphi 0, %s122
      %s137 = sphi 0, %s123
      %s141 = sphi 0, %s141
      %s143 = sphi 0, %s141
      %s144 = sphi 0, %s143
      %s158 = sphi 0, %s144
      %s162 = sphi 0, %s162
      %s164 = sphi 0, %s162
      %s165 = sphi 0, %s164
      %s179 = sphi 0, %s165
      %s183 = sphi 0, %s183
      %s185 = sphi 0, %s183
      %s186 = sphi 0, %s185
      %s200 = sphi 0, %s186
      %s204 = sphi 0, %s204
      %s206 = sphi 0, %s204
      %s207 = sphi 0, %s206
      %s221 = sphi 0, %s207
      %s227 = sphi 0, %s229
      %s230 = sphi 0, %s227
      %s231 = sphi 0, %s230
      %s247 = sphi 0, %s231
    $region4: #{tpu_custom_call.1} parent=1 // loop_header_branch
      %26 = sbr.rel (%p24) target = $region8
    $region5: #{tpu_custom_call.1} parent=1 // loop_body
      %s28 = ssub.s32 %s23, 1
      %s29 = ssub.s32 %s23, 2
      %s30 = sadd.s32 %s23, 1
      %s31 = ssub.s32 %s23, %s30
      %p32 = scmp.eq.s32.totalorder %s31, 0
      %s34 = sadd.s32 %s33, 1
      %s35 = scalar_select %p32, %s33, %s34
      %p38 = pneg %p32
      %p39 = scmp.eq.s32.totalorder %s23, 2
      %p40 = por %p38, %p39
      %p41 = scmp.ne.s32.totalorder %s33, %s36
      %p42 = scmp.eq.s32.totalorder %s23, 0
      %p43 = por %p41, %p42
      %p44 = scmp.ne.s32.totalorder %s33, %s36
      %p45 = scmp.eq.s32.totalorder %s28, 2
      %p46 = por %p44, %p45
      %p47 = scmp.ne.s32.totalorder %s36, %s37
      %p48 = scmp.eq.s32.totalorder %s28, 0
      %p49 = por %p47, %p48
      %p50 = scmp.ne.s32.totalorder %s36, %s37
      %p51 = scmp.eq.s32.totalorder %s29, 2
      %p52 = por %p50, %p51
      %p54 = scmp.ne.s32.totalorder %s37, %s53
      %p55 = scmp.eq.s32.totalorder %s29, 0
      %p56 = por %p54, %p55
      %s58 = sadd.s32 %s57, 1
      %p61 = scmp.eq.s32.totalorder %s23, 2
      %p62 = scmp.ne.s32.totalorder %s57, %s59
      %p63 = scmp.eq.s32.totalorder %s23, 0
      %p64 = por %p62, %p63
      %p65 = scmp.ne.s32.totalorder %s57, %s59
      %p66 = scmp.eq.s32.totalorder %s28, 2
      %p67 = por %p65, %p66
      %p68 = scmp.ne.s32.totalorder %s59, %s60
      %p69 = scmp.eq.s32.totalorder %s28, 0
      %p70 = por %p68, %p69
      %p71 = scmp.ne.s32.totalorder %s59, %s60
      %p72 = scmp.eq.s32.totalorder %s29, 2
      %p73 = por %p71, %p72
      %p75 = scmp.ne.s32.totalorder %s60, %s74
      %p76 = scmp.eq.s32.totalorder %s29, 0
      %p77 = por %p75, %p76
      %s79 = sadd.s32 %s78, 1
      %p82 = scmp.eq.s32.totalorder %s23, 2
      %p83 = scmp.ne.s32.totalorder %s78, %s80
      %p84 = scmp.eq.s32.totalorder %s23, 0
      %p85 = por %p83, %p84
      %p86 = scmp.ne.s32.totalorder %s78, %s80
      %p87 = scmp.eq.s32.totalorder %s28, 2
      %p88 = por %p86, %p87
      %p89 = scmp.ne.s32.totalorder %s80, %s81
      %p90 = scmp.eq.s32.totalorder %s28, 0
      %p91 = por %p89, %p90
      %p92 = scmp.ne.s32.totalorder %s80, %s81
      %p93 = scmp.eq.s32.totalorder %s29, 2
      %p94 = por %p92, %p93
      %p96 = scmp.ne.s32.totalorder %s81, %s95
      %p97 = scmp.eq.s32.totalorder %s29, 0
      %p98 = por %p96, %p97
      %s100 = sadd.s32 %s99, 1
      %p103 = scmp.eq.s32.totalorder %s23, 2
      %p104 = scmp.ne.s32.totalorder %s99, %s101
      %p105 = scmp.eq.s32.totalorder %s23, 0
      %p106 = por %p104, %p105
      %p107 = scmp.ne.s32.totalorder %s99, %s101
      %p108 = scmp.eq.s32.totalorder %s28, 2
      %p109 = por %p107, %p108
      %p110 = scmp.ne.s32.totalorder %s101, %s102
      %p111 = scmp.eq.s32.totalorder %s28, 0
      %p112 = por %p110, %p111
      %p113 = scmp.ne.s32.totalorder %s101, %s102
      %p114 = scmp.eq.s32.totalorder %s29, 2
      %p115 = por %p113, %p114
      %p117 = scmp.ne.s32.totalorder %s102, %s116
      %p118 = scmp.eq.s32.totalorder %s29, 0
      %p119 = por %p117, %p118
      %s121 = sadd.s32 %s120, 1
      %p124 = scmp.eq.s32.totalorder %s23, 2
      %p125 = scmp.ne.s32.totalorder %s120, %s122
      %p126 = scmp.eq.s32.totalorder %s23, 0
      %p127 = por %p125, %p126
      %p128 = scmp.ne.s32.totalorder %s120, %s122
      %p129 = scmp.eq.s32.totalorder %s28, 2
      %p130 = por %p128, %p129
      %p131 = scmp.ne.s32.totalorder %s122, %s123
      %p132 = scmp.eq.s32.totalorder %s28, 0
      %p133 = por %p131, %p132
      %p134 = scmp.ne.s32.totalorder %s122, %s123
      %p135 = scmp.eq.s32.totalorder %s29, 2
      %p136 = por %p134, %p135
      %p138 = scmp.ne.s32.totalorder %s123, %s137
      %p139 = scmp.eq.s32.totalorder %s29, 0
      %p140 = por %p138, %p139
      %s142 = sadd.s32 %s141, 1
      %p145 = scmp.eq.s32.totalorder %s23, 2
      %p146 = scmp.ne.s32.totalorder %s141, %s143
      %p147 = scmp.eq.s32.totalorder %s23, 0
      %p148 = por %p146, %p147
      %p149 = scmp.ne.s32.totalorder %s141, %s143
      %p150 = scmp.eq.s32.totalorder %s28, 2
      %p151 = por %p149, %p150
      %p152 = scmp.ne.s32.totalorder %s143, %s144
      %p153 = scmp.eq.s32.totalorder %s28, 0
      %p154 = por %p152, %p153
      %p155 = scmp.ne.s32.totalorder %s143, %s144
      %p156 = scmp.eq.s32.totalorder %s29, 2
      %p157 = por %p155, %p156
      %p159 = scmp.ne.s32.totalorder %s144, %s158
      %p160 = scmp.eq.s32.totalorder %s29, 0
      %p161 = por %p159, %p160
      %s163 = sadd.s32 %s162, 1
      %p166 = scmp.eq.s32.totalorder %s23, 2
      %p167 = scmp.ne.s32.totalorder %s162, %s164
      %p168 = scmp.eq.s32.totalorder %s23, 0
      %p169 = por %p167, %p168
      %p170 = scmp.ne.s32.totalorder %s162, %s164
      %p171 = scmp.eq.s32.totalorder %s28, 2
      %p172 = por %p170, %p171
      %p173 = scmp.ne.s32.totalorder %s164, %s165
      %p174 = scmp.eq.s32.totalorder %s28, 0
      %p175 = por %p173, %p174
      %p176 = scmp.ne.s32.totalorder %s164, %s165
      %p177 = scmp.eq.s32.totalorder %s29, 2
      %p178 = por %p176, %p177
      %p180 = scmp.ne.s32.totalorder %s165, %s179
      %p181 = scmp.eq.s32.totalorder %s29, 0
      %p182 = por %p180, %p181
      %s184 = sadd.s32 %s183, 1
      %p187 = scmp.eq.s32.totalorder %s23, 2
      %p188 = scmp.ne.s32.totalorder %s183, %s185
      %p189 = scmp.eq.s32.totalorder %s23, 0
      %p190 = por %p188, %p189
      %p191 = scmp.ne.s32.totalorder %s183, %s185
      %p192 = scmp.eq.s32.totalorder %s28, 2
      %p193 = por %p191, %p192
      %p194 = scmp.ne.s32.totalorder %s185, %s186
      %p195 = scmp.eq.s32.totalorder %s28, 0
      %p196 = por %p194, %p195
      %p197 = scmp.ne.s32.totalorder %s185, %s186
      %p198 = scmp.eq.s32.totalorder %s29, 2
      %p199 = por %p197, %p198
      %p201 = scmp.ne.s32.totalorder %s186, %s200
      %p202 = scmp.eq.s32.totalorder %s29, 0
      %p203 = por %p201, %p202
      %s205 = sadd.s32 %s204, 1
      %p208 = scmp.eq.s32.totalorder %s23, 2
      %p209 = scmp.ne.s32.totalorder %s204, %s206
      %p210 = scmp.eq.s32.totalorder %s23, 0
      %p211 = por %p209, %p210
      %p212 = scmp.ne.s32.totalorder %s204, %s206
      %p213 = scmp.eq.s32.totalorder %s28, 2
      %p214 = por %p212, %p213
      %p215 = scmp.ne.s32.totalorder %s206, %s207
      %p216 = scmp.eq.s32.totalorder %s28, 0
      %p217 = por %p215, %p216
      %p218 = scmp.ne.s32.totalorder %s206, %s207
      %p219 = scmp.eq.s32.totalorder %s29, 2
      %p220 = por %p218, %p219
      %p222 = scmp.ne.s32.totalorder %s207, %s221
      %p223 = scmp.eq.s32.totalorder %s29, 0
      %p224 = por %p222, %p223
      %s225 = ssub.s32 %s23, %s30
      %p226 = scmp.eq.s32.totalorder %s225, 0
      %s228 = sadd.s32 %s227, 1
      %s229 = scalar_select %p226, %s227, %s228
      %p232 = pneg %p226
      %p233 = scmp.eq.s32.totalorder %s23, 2
      %p234 = por %p232, %p233
      %p235 = scmp.ne.s32.totalorder %s227, %s230
      %p236 = scmp.eq.s32.totalorder %s23, 0
      %p237 = por %p235, %p236
      %p238 = scmp.ne.s32.totalorder %s227, %s230
      %p239 = scmp.eq.s32.totalorder %s28, 2
      %p240 = por %p238, %p239
      %p241 = scmp.ne.s32.totalorder %s230, %s231
      %p242 = scmp.eq.s32.totalorder %s28, 0
      %p243 = por %p241, %p242
      %p244 = scmp.ne.s32.totalorder %s230, %s231
      %p245 = scmp.eq.s32.totalorder %s29, 2
      %p246 = por %p244, %p245
      %p248 = scmp.ne.s32.totalorder %s231, %s247
      %p249 = scmp.eq.s32.totalorder %s29, 0
      %p250 = por %p248, %p249
      %p251 = scmp.le.s32.totalorder 1, %s23
      %p252 = scmp.lt.s32.totalorder %s23, 4
      %p253 = pnand %p251, %p252
      %p254 = pneg %p253
      // Predicated region
      $region9: #{tpu_custom_call.1} parent=5 // pred_check
        _
      $region10: #{tpu_custom_call.1} parent=5 // pred_check_branch
        %256 = sbr.rel (%p253) target = $region12
      $region11: #{tpu_custom_call.1} parent=5 // pred_region
        %s257 = ssub.s32 %s23, 1
        // Predicated region
        $region13: #{tpu_custom_call.1} parent=11 // pred_check
          %p258 = pneg %p70
        $region14: #{tpu_custom_call.1} parent=11 // pred_check_branch
          %260 = sbr.rel (%p258) target = $region16
        $region15: #{tpu_custom_call.1} parent=11 // pred_region
          _
        $region16: #{tpu_custom_call.1} parent=11 // pred_fallthru
          _
        // Predicated region
        $region17: #{tpu_custom_call.1} parent=11 // pred_check
          %p261 = pneg %p91
        $region18: #{tpu_custom_call.1} parent=11 // pred_check_branch
          %263 = sbr.rel (%p261) target = $region20
        $region19: #{tpu_custom_call.1} parent=11 // pred_region
          _
        $region20: #{tpu_custom_call.1} parent=11 // pred_fallthru
          _
        // Predicated region
        $region21: #{tpu_custom_call.1} parent=11 // pred_check
          %p264 = pneg %p112
        $region22: #{tpu_custom_call.1} parent=11 // pred_check_branch
          %266 = sbr.rel (%p264) target = $region24
        $region23: #{tpu_custom_call.1} parent=11 // pred_region
          _
        $region24: #{tpu_custom_call.1} parent=11 // pred_fallthru
          _
        // Predicated region
        $region25: #{tpu_custom_call.1} parent=11 // pred_check
          %p267 = pneg %p133
        $region26: #{tpu_custom_call.1} parent=11 // pred_check_branch
          %269 = sbr.rel (%p267) target = $region28
        $region27: #{tpu_custom_call.1} parent=11 // pred_region
          _
        $region28: #{tpu_custom_call.1} parent=11 // pred_fallthru
          _
        // Predicated region
        $region29: #{tpu_custom_call.1} parent=11 // pred_check
          %p270 = pneg %p154
        $region30: #{tpu_custom_call.1} parent=11 // pred_check_branch
          %272 = sbr.rel (%p270) target = $region32
        $region31: #{tpu_custom_call.1} parent=11 // pred_region
          _
        $region32: #{tpu_custom_call.1} parent=11 // pred_fallthru
          _
        // Predicated region
        $region33: #{tpu_custom_call.1} parent=11 // pred_check
          %p273 = pneg %p175
        $region34: #{tpu_custom_call.1} parent=11 // pred_check_branch
          %275 = sbr.rel (%p273) target = $region36
        $region35: #{tpu_custom_call.1} parent=11 // pred_region
          _
        $region36: #{tpu_custom_call.1} parent=11 // pred_fallthru
          _
        // Predicated region
        $region37: #{tpu_custom_call.1} parent=11 // pred_check
          %p276 = pneg %p196
        $region38: #{tpu_custom_call.1} parent=11 // pred_check_branch
          %278 = sbr.rel (%p276) target = $region40
        $region39: #{tpu_custom_call.1} parent=11 // pred_region
          _
        $region40: #{tpu_custom_call.1} parent=11 // pred_fallthru
          _
        // Predicated region
        $region41: #{tpu_custom_call.1} parent=11 // pred_check
          %p279 = pneg %p217
        $region42: #{tpu_custom_call.1} parent=11 // pred_check_branch
          %281 = sbr.rel (%p279) target = $region44
        $region43: #{tpu_custom_call.1} parent=11 // pred_region
          _
        $region44: #{tpu_custom_call.1} parent=11 // pred_fallthru
          _
      $region12: #{tpu_custom_call.1} parent=5 // pred_fallthru
        _
      %p282 = scmp.lt.s32.totalorder %s23, 3
      // Predicated region
      $region45: #{tpu_custom_call.1} parent=5 // pred_check
        %p283 = pneg %p282
      $region46: #{tpu_custom_call.1} parent=5 // pred_check_branch
        %285 = sbr.rel (%p283) target = $region48
      $region47: #{tpu_custom_call.1} parent=5 // pred_region
        // Predicated region
        $region49: #{tpu_custom_call.1} parent=47 // pred_check
          %p286 = pneg %p43
        $region50: #{tpu_custom_call.1} parent=47 // pred_check_branch
          %288 = sbr.rel (%p286) target = $region52
        $region51: #{tpu_custom_call.1} parent=47 // pred_region
          %s289 = sand.u32 %s33, 1
          %s290 = scalar_lea.sflag [#allocation4], %s289
          %s291 = sand.u32 %s33, 1
          %s292 = smul.addr %s291, 32
          %s293 = scalar_lea.vmem [#allocation3], %s292
          %s294 = smul.u32 8, %s23
          %296 = vsyncadd %s290, 0
          %s297 = smul.addr %s294, 4
          %s298 = scalar_lea.hbm %s0, %s297
          %s300 = sshll.u32 %s298, 4
          %s301 = int_to_ptr.hbm [resolvable:$true] %s300
          %s302 = sshll.u32 %s293, 4
          %s303 = int_to_ptr.vmem [resolvable:$true] %s302
          %305 = dma.hbm_to_vmem [thread:$0]  %s301, 512, %s303, %s290
        $region52: #{tpu_custom_call.1} parent=47 // pred_fallthru
          _
      $region48: #{tpu_custom_call.1} parent=5 // pred_fallthru
        _
      %p306 = scmp.le.s32.totalorder 1, %s23
      %p307 = scmp.lt.s32.totalorder %s23, 4
      %p308 = pnand %p306, %p307
      %p309 = pneg %p308
      // Predicated region
      $region53: #{tpu_custom_call.1} parent=5 // pred_check
        _
      $region54: #{tpu_custom_call.1} parent=5 // pred_check_branch
        %311 = sbr.rel (%p308) target = $region56
      $region55: #{tpu_custom_call.1} parent=5 // pred_region
        %s312 = ssub.s32 %s23, 1
        %s313 = sand.u32 %s36, 1
        %s314 = scalar_lea.sflag [#allocation4], %s313
        %s315 = sand.u32 %s36, 1
        %s316 = smul.addr %s315, 32
        %s317 = scalar_lea.vmem [#allocation3], %s316
        // Predicated region
        $region57: #{tpu_custom_call.1} parent=55 // pred_check
          %p318 = pneg %p49
        $region58: #{tpu_custom_call.1} parent=55 // pred_check_branch
          %320 = sbr.rel (%p318) target = $region60
        $region59: #{tpu_custom_call.1} parent=55 // pred_region
          %322 = dma.done %s314, 512
        $region60: #{tpu_custom_call.1} parent=55 // pred_fallthru
          _
        %s323 = sand.u32 %s36, 1
        %s324 = scalar_lea.sflag [#allocation4], %s323
        %s325 = sand.u32 %s36, 1
        %s326 = smul.addr %s325, 32
        %s327 = scalar_lea.vmem [#allocation3], %s326
        %p328 = pneg %p49
        %p329 = pneg %p46
        %p330 = pneg %p70
        %p331 = pneg %p67
        %p332 = pneg %p91
        %p333 = pneg %p88
        %p334 = pneg %p112
        %p335 = pneg %p109
        %p336 = pneg %p133
        %p337 = pneg %p130
        %p338 = pneg %p154
        %p339 = pneg %p151
        %p340 = pneg %p175
        %p341 = pneg %p172
        %p342 = pneg %p196
        %p343 = pneg %p193
        %p344 = pneg %p217
        %p345 = pneg %p214
        %p346 = pneg %p243
        %p347 = pneg %p240
        %s348 = sand.u32 %s230, 1
        %s349 = scalar_lea.sflag [#allocation5], %s348
        %s350 = sand.u32 %s230, 1
        %s351 = smul.addr %s350, 8
        %s352 = scalar_lea.vmem [#allocation6], %s351
        %s353 = smul.u32 8, %s28
        %s354 = smul.u32 8, %s28
        %v355 = vld [vmem:[%s1] sm:$0xff]
        %v356 = vld [vmem:[%s1 + $0x8] sm:$0xff]
        %v357 = vld [vmem:[%s1 + $0x10] sm:$0xff]
        %v358 = vld [vmem:[%s1 + $0x18] sm:$0xff]
        %v359 = vld [vmem:[%s2] sm:$0xff]
        %v360 = vld [vmem:[%s2 + $0x8] sm:$0xff]
        %v361 = vld [vmem:[%s2 + $0x10] sm:$0xff]
        %v362 = vld [vmem:[%s2 + $0x18] sm:$0xff]
        %v363 = vld [vmem:[%s3] sm:$0xff]
        %v364 = vld [vmem:[%s3 + $0x8] sm:$0xff]
        %v365 = vld [vmem:[%s3 + $0x10] sm:$0xff]
        %v366 = vld [vmem:[%s3 + $0x18] sm:$0xff]
        %v367 = vld [vmem:[%s5] sm:$0xff]
        %v368 = vld [vmem:[%s5 + $0x8] sm:$0xff]
        %v369 = vld [vmem:[%s5 + $0x10] sm:$0xff]
        %v370 = vld [vmem:[%s5 + $0x18] sm:$0xff]
        %v371 = vld [vmem:[%s4] sm:$0xff]
        %v372 = vld [vmem:[%s4 + $0x8] sm:$0xff]
        %v373 = vld [vmem:[%s4 + $0x10] sm:$0xff]
        %v374 = vld [vmem:[%s4 + $0x18] sm:$0xff]
        %v375 = vld [vmem:[%s6] sm:$0xff]
        %v376 = vld [vmem:[%s6 + $0x8] sm:$0xff]
        %v377 = vld [vmem:[%s6 + $0x10] sm:$0xff]
        %v378 = vld [vmem:[%s6 + $0x18] sm:$0xff]
        %v379 = vld [vmem:[%s7] sm:$0x1]
        %v380 = vld [vmem:[#allocation2] sm:$0x1]
        %v381 = vld [vmem:[%s317] sm:$0x77]
        %v382 = vld [vmem:[%s317 + $0x8] sm:$0x77]
        %384 = vset.pattern.permute.xlu0 0
        %385 = vperm.xlu0 %384, %v355
        %v386 = vpop.permute.xlu0 %385
        %389 = vset.pattern.permute.xlu0 0
        %390 = vperm.xlu0 %389, %v356
        %v391 = vpop.permute.xlu0 %390
        %394 = vset.pattern.permute.xlu0 0
        %395 = vperm.xlu0 %394, %v357
        %v396 = vpop.permute.xlu0 %395
        %399 = vset.pattern.permute.xlu0 0
        %400 = vperm.xlu0 %399, %v358
        %v401 = vpop.permute.xlu0 %400
        %v405 = vperm.slane %v381, 0
        %v406 = vperm.slane %v381, 4
        %v407 = vperm.slane %v382, 0
        %v408 = vperm.slane %v382, 4
        %v413 = vperm.slane %v405, 0
        %v414 = vperm.slane %v406, 0
        %v415 = vperm.slane %v407, 0
        %v416 = vperm.slane %v408, 0
        %v417 = vmul.f32 %v386, %v413
        %v418 = vmul.f32 %v386, %v414
        %v419 = vmul.f32 %v386, %v415
        %v420 = vmul.f32 %v386, %v416
        %v421 = vmul.f32 %v391, %v413
        %v422 = vmul.f32 %v391, %v414
        %v423 = vmul.f32 %v391, %v415
        %v424 = vmul.f32 %v391, %v416
        %v425 = vmul.f32 %v396, %v413
        %v426 = vmul.f32 %v396, %v414
        %v427 = vmul.f32 %v396, %v415
        %v428 = vmul.f32 %v396, %v416
        %v429 = vmul.f32 %v401, %v413
        %v430 = vmul.f32 %v401, %v414
        %v431 = vmul.f32 %v401, %v415
        %v432 = vmul.f32 %v401, %v416
        %433 = vset.pattern.permute.xlu0 1
        %434 = vperm.xlu0 %433, %v355
        %v435 = vpop.permute.xlu0 %434
        %437 = vset.pattern.permute.xlu0 1
        %438 = vperm.xlu0 %437, %v356
        %v439 = vpop.permute.xlu0 %438
        %441 = vset.pattern.permute.xlu0 1
        %442 = vperm.xlu0 %441, %v357
        %v443 = vpop.permute.xlu0 %442
        %445 = vset.pattern.permute.xlu0 1
        %446 = vperm.xlu0 %445, %v358
        %v447 = vpop.permute.xlu0 %446
        %v449 = vperm.slane %v381, 1
        %v450 = vperm.slane %v381, 5
        %v451 = vperm.slane %v382, 1
        %v452 = vperm.slane %v382, 5
        %v457 = vperm.slane %v449, 1
        %v458 = vperm.slane %v450, 1
        %v459 = vperm.slane %v451, 1
        %v460 = vperm.slane %v452, 1
        %v461 = vmul.f32 %v435, %v457
        %v462 = vmul.f32 %v435, %v458
        %v463 = vmul.f32 %v435, %v459
        %v464 = vmul.f32 %v435, %v460
        %v465 = vmul.f32 %v439, %v457
        %v466 = vmul.f32 %v439, %v458
        %v467 = vmul.f32 %v439, %v459
        %v468 = vmul.f32 %v439, %v460
        %v469 = vmul.f32 %v443, %v457
        %v470 = vmul.f32 %v443, %v458
        %v471 = vmul.f32 %v443, %v459
        %v472 = vmul.f32 %v443, %v460
        %v473 = vmul.f32 %v447, %v457
        %v474 = vmul.f32 %v447, %v458
        %v475 = vmul.f32 %v447, %v459
        %v476 = vmul.f32 %v447, %v460
        %v477 = vadd.f32 %v417, %v461
        %v478 = vadd.f32 %v418, %v462
        %v479 = vadd.f32 %v419, %v463
        %v480 = vadd.f32 %v420, %v464
        %v481 = vadd.f32 %v421, %v465
        %v482 = vadd.f32 %v422, %v466
        %v483 = vadd.f32 %v423, %v467
        %v484 = vadd.f32 %v424, %v468
        %v485 = vadd.f32 %v425, %v469
        %v486 = vadd.f32 %v426, %v470
        %v487 = vadd.f32 %v427, %v471
        %v488 = vadd.f32 %v428, %v472
        %v489 = vadd.f32 %v429, %v473
        %v490 = vadd.f32 %v430, %v474
        %v491 = vadd.f32 %v431, %v475
        %v492 = vadd.f32 %v432, %v476
        %493 = vset.pattern.permute.xlu0 2
        %494 = vperm.xlu0 %493, %v355
        %v495 = vpop.permute.xlu0 %494
        %497 = vset.pattern.permute.xlu0 2
        %498 = vperm.xlu0 %497, %v356
        %v499 = vpop.permute.xlu0 %498
        %501 = vset.pattern.permute.xlu0 2
        %502 = vperm.xlu0 %501, %v357
        %v503 = vpop.permute.xlu0 %502
        %505 = vset.pattern.permute.xlu0 2
        %506 = vperm.xlu0 %505, %v358
        %v507 = vpop.permute.xlu0 %506
        %v509 = vperm.slane %v381, 2
        %v510 = vperm.slane %v381, 6
        %v511 = vperm.slane %v382, 2
        %v512 = vperm.slane %v382, 6
        %v517 = vperm.slane %v509, 2
        %v518 = vperm.slane %v510, 2
        %v519 = vperm.slane %v511, 2
        %v520 = vperm.slane %v512, 2
        %v521 = vmul.f32 %v495, %v517
        %v522 = vmul.f32 %v495, %v518
        %v523 = vmul.f32 %v495, %v519
        %v524 = vmul.f32 %v495, %v520
        %v525 = vmul.f32 %v499, %v517
        %v526 = vmul.f32 %v499, %v518
        %v527 = vmul.f32 %v499, %v519
        %v528 = vmul.f32 %v499, %v520
        %v529 = vmul.f32 %v503, %v517
        %v530 = vmul.f32 %v503, %v518
        %v531 = vmul.f32 %v503, %v519
        %v532 = vmul.f32 %v503, %v520
        %v533 = vmul.f32 %v507, %v517
        %v534 = vmul.f32 %v507, %v518
        %v535 = vmul.f32 %v507, %v519
        %v536 = vmul.f32 %v507, %v520
        %v537 = vadd.f32 %v477, %v521
        %v538 = vadd.f32 %v478, %v522
        %v539 = vadd.f32 %v479, %v523
        %v540 = vadd.f32 %v480, %v524
        %v541 = vadd.f32 %v481, %v525
        %v542 = vadd.f32 %v482, %v526
        %v543 = vadd.f32 %v483, %v527
        %v544 = vadd.f32 %v484, %v528
        %v545 = vadd.f32 %v485, %v529
        %v546 = vadd.f32 %v486, %v530
        %v547 = vadd.f32 %v487, %v531
        %v548 = vadd.f32 %v488, %v532
        %v549 = vadd.f32 %v489, %v533
        %v550 = vadd.f32 %v490, %v534
        %v551 = vadd.f32 %v491, %v535
        %v552 = vadd.f32 %v492, %v536
        %554 = vset.pattern.permute.xlu0 0
        %555 = vperm.xlu0 %554, %v359
        %v556 = vpop.permute.xlu0 %555
        %559 = vset.pattern.permute.xlu0 0
        %560 = vperm.xlu0 %559, %v360
        %v561 = vpop.permute.xlu0 %560
        %564 = vset.pattern.permute.xlu0 0
        %565 = vperm.xlu0 %564, %v361
        %v566 = vpop.permute.xlu0 %565
        %569 = vset.pattern.permute.xlu0 0
        %570 = vperm.xlu0 %569, %v362
        %v571 = vpop.permute.xlu0 %570
        %v573 = vadd.f32 %v537, %v556
        %v574 = vadd.f32 %v538, %v556
        %v575 = vadd.f32 %v539, %v556
        %v576 = vadd.f32 %v540, %v556
        %v577 = vadd.f32 %v541, %v561
        %v578 = vadd.f32 %v542, %v561
        %v579 = vadd.f32 %v543, %v561
        %v580 = vadd.f32 %v544, %v561
        %v581 = vadd.f32 %v545, %v566
        %v582 = vadd.f32 %v546, %v566
        %v583 = vadd.f32 %v547, %v566
        %v584 = vadd.f32 %v548, %v566
        %v585 = vadd.f32 %v549, %v571
        %v586 = vadd.f32 %v550, %v571
        %v587 = vadd.f32 %v551, %v571
        %v588 = vadd.f32 %v552, %v571
        %v589 = vmax.f32 %v573, 0.0
        %v590 = vmax.f32 %v574, 0.0
        %v591 = vmax.f32 %v575, 0.0
        %v592 = vmax.f32 %v576, 0.0
        %v593 = vmax.f32 %v577, 0.0
        %v594 = vmax.f32 %v578, 0.0
        %v595 = vmax.f32 %v579, 0.0
        %v596 = vmax.f32 %v580, 0.0
        %v597 = vmax.f32 %v581, 0.0
        %v598 = vmax.f32 %v582, 0.0
        %v599 = vmax.f32 %v583, 0.0
        %v600 = vmax.f32 %v584, 0.0
        %v601 = vmax.f32 %v585, 0.0
        %v602 = vmax.f32 %v586, 0.0
        %v603 = vmax.f32 %v587, 0.0
        %v604 = vmax.f32 %v588, 0.0
        %606 = vset.pattern.permute.xlu0 0
        %607 = vperm.xlu0 %606, %v371
        %v608 = vpop.permute.xlu0 %607
        %611 = vset.pattern.permute.xlu0 0
        %612 = vperm.xlu0 %611, %v372
        %v613 = vpop.permute.xlu0 %612
        %616 = vset.pattern.permute.xlu0 0
        %617 = vperm.xlu0 %616, %v373
        %v618 = vpop.permute.xlu0 %617
        %621 = vset.pattern.permute.xlu0 0
        %622 = vperm.xlu0 %621, %v374
        %v623 = vpop.permute.xlu0 %622
        %vm625 = vcmask 261120
        %v627 = vsel %vm625, %v363, 0
        %v630 = vsel %vm625, %v364, 0
        %v633 = vsel %vm625, %v365, 0
        %v636 = vsel %vm625, %v366, 0
        %638 = vmatpush.msra.mxu0 0.0
        %639 = vmatpush.msra.mxu0 0.0
        %640 = vmatpush.msra.mxu0 0.0
        %641 = vmatpush.msra.mxu0 0.0
        %642 = vmatpush.msra.mxu0 0.0
        %643 = vmatpush.msra.mxu0 0.0
        %644 = vmatpush.msra.mxu0 0.0
        %645 = vmatpush.msra.mxu0 0.0
        %646 = vmatpush.msra.mxu0 0.0
        %647 = vmatpush.msra.mxu0 0.0
        %648 = vmatpush.msra.mxu0 0.0
        %649 = vmatpush.msra.mxu0 0.0
        %650 = vmatpush.msra.mxu0 %v601
        %651 = vmatpush.msra.mxu0 %v597
        %652 = vmatpush.msra.mxu0 %v593
        %653 = vmatpush.msra.mxu0 %v589
        %654 = vmatmul.f32.gmra.mxu0 %v627
        %v655 = vpop.f32.mrf.mxu0
        %v656 = vadd.f32 %v608, %v655
        %657 = vmatmul.f32.gmra.mxu0 %v630
        %v658 = vpop.f32.mrf.mxu0
        %v659 = vadd.f32 %v613, %v658
        %660 = vmatmul.f32.gmra.mxu0 %v633
        %v661 = vpop.f32.mrf.mxu0
        %v662 = vadd.f32 %v618, %v661
        %663 = vmatmul.f32.gmra.mxu0 %v636
        %v664 = vpop.f32.mrf.mxu0
        %v665 = vadd.f32 %v623, %v664
        %666 = vdwg.mxu0
        %667 = vmatpush.msra.mxu0 0.0
        %668 = vmatpush.msra.mxu0 0.0
        %669 = vmatpush.msra.mxu0 0.0
        %670 = vmatpush.msra.mxu0 0.0
        %671 = vmatpush.msra.mxu0 0.0
        %672 = vmatpush.msra.mxu0 0.0
        %673 = vmatpush.msra.mxu0 0.0
        %674 = vmatpush.msra.mxu0 0.0
        %675 = vmatpush.msra.mxu0 0.0
        %676 = vmatpush.msra.mxu0 0.0
        %677 = vmatpush.msra.mxu0 0.0
        %678 = vmatpush.msra.mxu0 0.0
        %679 = vmatpush.msra.mxu0 %v602
        %680 = vmatpush.msra.mxu0 %v598
        %681 = vmatpush.msra.mxu0 %v594
        %682 = vmatpush.msra.mxu0 %v590
        %683 = vmatmul.f32.gmra.mxu0 %v627
        %v684 = vpop.f32.mrf.mxu0
        %v685 = vadd.f32 %v608, %v684
        %686 = vmatmul.f32.gmra.mxu0 %v630
        %v687 = vpop.f32.mrf.mxu0
        %v688 = vadd.f32 %v613, %v687
        %689 = vmatmul.f32.gmra.mxu0 %v633
        %v690 = vpop.f32.mrf.mxu0
        %v691 = vadd.f32 %v618, %v690
        %692 = vmatmul.f32.gmra.mxu0 %v636
        %v693 = vpop.f32.mrf.mxu0
        %v694 = vadd.f32 %v623, %v693
        %695 = vdwg.mxu0
        %696 = vmatpush.msra.mxu0 0.0
        %697 = vmatpush.msra.mxu0 0.0
        %698 = vmatpush.msra.mxu0 0.0
        %699 = vmatpush.msra.mxu0 0.0
        %700 = vmatpush.msra.mxu0 0.0
        %701 = vmatpush.msra.mxu0 0.0
        %702 = vmatpush.msra.mxu0 0.0
        %703 = vmatpush.msra.mxu0 0.0
        %704 = vmatpush.msra.mxu0 0.0
        %705 = vmatpush.msra.mxu0 0.0
        %706 = vmatpush.msra.mxu0 0.0
        %707 = vmatpush.msra.mxu0 0.0
        %708 = vmatpush.msra.mxu0 %v603
        %709 = vmatpush.msra.mxu0 %v599
        %710 = vmatpush.msra.mxu0 %v595
        %711 = vmatpush.msra.mxu0 %v591
        %712 = vmatmul.f32.gmra.mxu0 %v627
        %v713 = vpop.f32.mrf.mxu0
        %v714 = vadd.f32 %v608, %v713
        %715 = vmatmul.f32.gmra.mxu0 %v630
        %v716 = vpop.f32.mrf.mxu0
        %v717 = vadd.f32 %v613, %v716
        %718 = vmatmul.f32.gmra.mxu0 %v633
        %v719 = vpop.f32.mrf.mxu0
        %v720 = vadd.f32 %v618, %v719
        %721 = vmatmul.f32.gmra.mxu0 %v636
        %v722 = vpop.f32.mrf.mxu0
        %v723 = vadd.f32 %v623, %v722
        %724 = vdwg.mxu0
        %725 = vmatpush.msra.mxu0 0.0
        %726 = vmatpush.msra.mxu0 0.0
        %727 = vmatpush.msra.mxu0 0.0
        %728 = vmatpush.msra.mxu0 0.0
        %729 = vmatpush.msra.mxu0 0.0
        %730 = vmatpush.msra.mxu0 0.0
        %731 = vmatpush.msra.mxu0 0.0
        %732 = vmatpush.msra.mxu0 0.0
        %733 = vmatpush.msra.mxu0 0.0
        %734 = vmatpush.msra.mxu0 0.0
        %735 = vmatpush.msra.mxu0 0.0
        %736 = vmatpush.msra.mxu0 0.0
        %737 = vmatpush.msra.mxu0 %v604
        %738 = vmatpush.msra.mxu0 %v600
        %739 = vmatpush.msra.mxu0 %v596
        %740 = vmatpush.msra.mxu0 %v592
        %741 = vmatmul.f32.gmra.mxu0 %v627
        %v742 = vpop.f32.mrf.mxu0
        %v743 = vadd.f32 %v608, %v742
        %744 = vmatmul.f32.gmra.mxu0 %v630
        %v745 = vpop.f32.mrf.mxu0
        %v746 = vadd.f32 %v613, %v745
        %747 = vmatmul.f32.gmra.mxu0 %v633
        %v748 = vpop.f32.mrf.mxu0
        %v749 = vadd.f32 %v618, %v748
        %750 = vmatmul.f32.gmra.mxu0 %v636
        %v751 = vpop.f32.mrf.mxu0
        %v752 = vadd.f32 %v623, %v751
        %753 = vdwg.mxu0
        %v754 = vmax.f32 %v656, 0.0
        %v755 = vmax.f32 %v685, 0.0
        %v756 = vmax.f32 %v714, 0.0
        %v757 = vmax.f32 %v743, 0.0
        %v758 = vmax.f32 %v659, 0.0
        %v759 = vmax.f32 %v688, 0.0
        %v760 = vmax.f32 %v717, 0.0
        %v761 = vmax.f32 %v746, 0.0
        %v762 = vmax.f32 %v662, 0.0
        %v763 = vmax.f32 %v691, 0.0
        %v764 = vmax.f32 %v720, 0.0
        %v765 = vmax.f32 %v749, 0.0
        %v766 = vmax.f32 %v665, 0.0
        %v767 = vmax.f32 %v694, 0.0
        %v768 = vmax.f32 %v723, 0.0
        %v769 = vmax.f32 %v752, 0.0
        %771 = vset.pattern.permute.xlu0 0
        %772 = vperm.xlu0 %771, %v375
        %v773 = vpop.permute.xlu0 %772
        %776 = vset.pattern.permute.xlu0 0
        %777 = vperm.xlu0 %776, %v376
        %v778 = vpop.permute.xlu0 %777
        %781 = vset.pattern.permute.xlu0 0
        %782 = vperm.xlu0 %781, %v377
        %v783 = vpop.permute.xlu0 %782
        %786 = vset.pattern.permute.xlu0 0
        %787 = vperm.xlu0 %786, %v378
        %v788 = vpop.permute.xlu0 %787
        %v791 = vsel %vm625, %v367, 0
        %v794 = vsel %vm625, %v368, 0
        %v797 = vsel %vm625, %v369, 0
        %v800 = vsel %vm625, %v370, 0
        %802 = vmatpush.msra.mxu0 0.0
        %803 = vmatpush.msra.mxu0 0.0
        %804 = vmatpush.msra.mxu0 0.0
        %805 = vmatpush.msra.mxu0 0.0
        %806 = vmatpush.msra.mxu0 0.0
        %807 = vmatpush.msra.mxu0 0.0
        %808 = vmatpush.msra.mxu0 0.0
        %809 = vmatpush.msra.mxu0 0.0
        %810 = vmatpush.msra.mxu0 0.0
        %811 = vmatpush.msra.mxu0 0.0
        %812 = vmatpush.msra.mxu0 0.0
        %813 = vmatpush.msra.mxu0 0.0
        %814 = vmatpush.msra.mxu0 %v766
        %815 = vmatpush.msra.mxu0 %v762
        %816 = vmatpush.msra.mxu0 %v758
        %817 = vmatpush.msra.mxu0 %v754
        %818 = vmatmul.f32.gmra.mxu0 %v791
        %v819 = vpop.f32.mrf.mxu0
        %v820 = vadd.f32 %v773, %v819
        %821 = vmatmul.f32.gmra.mxu0 %v794
        %v822 = vpop.f32.mrf.mxu0
        %v823 = vadd.f32 %v778, %v822
        %824 = vmatmul.f32.gmra.mxu0 %v797
        %v825 = vpop.f32.mrf.mxu0
        %v826 = vadd.f32 %v783, %v825
        %827 = vmatmul.f32.gmra.mxu0 %v800
        %v828 = vpop.f32.mrf.mxu0
        %v829 = vadd.f32 %v788, %v828
        %830 = vdwg.mxu0
        %831 = vmatpush.msra.mxu0 0.0
        %832 = vmatpush.msra.mxu0 0.0
        %833 = vmatpush.msra.mxu0 0.0
        %834 = vmatpush.msra.mxu0 0.0
        %835 = vmatpush.msra.mxu0 0.0
        %836 = vmatpush.msra.mxu0 0.0
        %837 = vmatpush.msra.mxu0 0.0
        %838 = vmatpush.msra.mxu0 0.0
        %839 = vmatpush.msra.mxu0 0.0
        %840 = vmatpush.msra.mxu0 0.0
        %841 = vmatpush.msra.mxu0 0.0
        %842 = vmatpush.msra.mxu0 0.0
        %843 = vmatpush.msra.mxu0 %v767
        %844 = vmatpush.msra.mxu0 %v763
        %845 = vmatpush.msra.mxu0 %v759
        %846 = vmatpush.msra.mxu0 %v755
        %847 = vmatmul.f32.gmra.mxu0 %v791
        %v848 = vpop.f32.mrf.mxu0
        %v849 = vadd.f32 %v773, %v848
        %850 = vmatmul.f32.gmra.mxu0 %v794
        %v851 = vpop.f32.mrf.mxu0
        %v852 = vadd.f32 %v778, %v851
        %853 = vmatmul.f32.gmra.mxu0 %v797
        %v854 = vpop.f32.mrf.mxu0
        %v855 = vadd.f32 %v783, %v854
        %856 = vmatmul.f32.gmra.mxu0 %v800
        %v857 = vpop.f32.mrf.mxu0
        %v858 = vadd.f32 %v788, %v857
        %859 = vdwg.mxu0
        %860 = vmatpush.msra.mxu0 0.0
        %861 = vmatpush.msra.mxu0 0.0
        %862 = vmatpush.msra.mxu0 0.0
        %863 = vmatpush.msra.mxu0 0.0
        %864 = vmatpush.msra.mxu0 0.0
        %865 = vmatpush.msra.mxu0 0.0
        %866 = vmatpush.msra.mxu0 0.0
        %867 = vmatpush.msra.mxu0 0.0
        %868 = vmatpush.msra.mxu0 0.0
        %869 = vmatpush.msra.mxu0 0.0
        %870 = vmatpush.msra.mxu0 0.0
        %871 = vmatpush.msra.mxu0 0.0
        %872 = vmatpush.msra.mxu0 %v768
        %873 = vmatpush.msra.mxu0 %v764
        %874 = vmatpush.msra.mxu0 %v760
        %875 = vmatpush.msra.mxu0 %v756
        %876 = vmatmul.f32.gmra.mxu0 %v791
        %v877 = vpop.f32.mrf.mxu0
        %v878 = vadd.f32 %v773, %v877
        %879 = vmatmul.f32.gmra.mxu0 %v794
        %v880 = vpop.f32.mrf.mxu0
        %v881 = vadd.f32 %v778, %v880
        %882 = vmatmul.f32.gmra.mxu0 %v797
        %v883 = vpop.f32.mrf.mxu0
        %v884 = vadd.f32 %v783, %v883
        %885 = vmatmul.f32.gmra.mxu0 %v800
        %v886 = vpop.f32.mrf.mxu0
        %v887 = vadd.f32 %v788, %v886
        %888 = vdwg.mxu0
        %889 = vmatpush.msra.mxu0 0.0
        %890 = vmatpush.msra.mxu0 0.0
        %891 = vmatpush.msra.mxu0 0.0
        %892 = vmatpush.msra.mxu0 0.0
        %893 = vmatpush.msra.mxu0 0.0
        %894 = vmatpush.msra.mxu0 0.0
        %895 = vmatpush.msra.mxu0 0.0
        %896 = vmatpush.msra.mxu0 0.0
        %897 = vmatpush.msra.mxu0 0.0
        %898 = vmatpush.msra.mxu0 0.0
        %899 = vmatpush.msra.mxu0 0.0
        %900 = vmatpush.msra.mxu0 0.0
        %901 = vmatpush.msra.mxu0 %v769
        %902 = vmatpush.msra.mxu0 %v765
        %903 = vmatpush.msra.mxu0 %v761
        %904 = vmatpush.msra.mxu0 %v757
        %905 = vmatmul.f32.gmra.mxu0 %v791
        %v906 = vpop.f32.mrf.mxu0
        %v907 = vadd.f32 %v773, %v906
        %908 = vmatmul.f32.gmra.mxu0 %v794
        %v909 = vpop.f32.mrf.mxu0
        %v910 = vadd.f32 %v778, %v909
        %911 = vmatmul.f32.gmra.mxu0 %v797
        %v912 = vpop.f32.mrf.mxu0
        %v913 = vadd.f32 %v783, %v912
        %914 = vmatmul.f32.gmra.mxu0 %v800
        %v915 = vpop.f32.mrf.mxu0
        %v916 = vadd.f32 %v788, %v915
        %917 = vdwg.mxu0
        %v918 = vmax.f32 %v820, 0.0
        %v919 = vmax.f32 %v849, 0.0
        %v920 = vmax.f32 %v878, 0.0
        %v921 = vmax.f32 %v907, 0.0
        %v922 = vmax.f32 %v823, 0.0
        %v923 = vmax.f32 %v852, 0.0
        %v924 = vmax.f32 %v881, 0.0
        %v925 = vmax.f32 %v910, 0.0
        %v926 = vmax.f32 %v826, 0.0
        %v927 = vmax.f32 %v855, 0.0
        %v928 = vmax.f32 %v884, 0.0
        %v929 = vmax.f32 %v913, 0.0
        %v930 = vmax.f32 %v829, 0.0
        %v931 = vmax.f32 %v858, 0.0
        %v932 = vmax.f32 %v887, 0.0
        %v933 = vmax.f32 %v916, 0.0
        %935 = vset.pattern.permute.xlu0 0
        %936 = vperm.xlu0 %935, %v380
        %v937 = vpop.permute.xlu0 %936
        %v939 = vperm.slane %v937, 0
        %v941 = vsel %vm625, %v379, 0
        %943 = vmatpush.msra.mxu0 0.0
        %944 = vmatpush.msra.mxu0 0.0
        %945 = vmatpush.msra.mxu0 0.0
        %946 = vmatpush.msra.mxu0 0.0
        %947 = vmatpush.msra.mxu0 0.0
        %948 = vmatpush.msra.mxu0 0.0
        %949 = vmatpush.msra.mxu0 0.0
        %950 = vmatpush.msra.mxu0 0.0
        %951 = vmatpush.msra.mxu0 0.0
        %952 = vmatpush.msra.mxu0 0.0
        %953 = vmatpush.msra.mxu0 0.0
        %954 = vmatpush.msra.mxu0 0.0
        %955 = vmatpush.msra.mxu0 %v930
        %956 = vmatpush.msra.mxu0 %v926
        %957 = vmatpush.msra.mxu0 %v922
        %958 = vmatpush.msra.mxu0 %v918
        %959 = vmatmul.f32.gmra.mxu0 %v941
        %v960 = vpop.f32.mrf.mxu0
        %v961 = vadd.f32 %v939, %v960
        %962 = vdwg.mxu0
        %963 = vmatpush.msra.mxu0 0.0
        %964 = vmatpush.msra.mxu0 0.0
        %965 = vmatpush.msra.mxu0 0.0
        %966 = vmatpush.msra.mxu0 0.0
        %967 = vmatpush.msra.mxu0 0.0
        %968 = vmatpush.msra.mxu0 0.0
        %969 = vmatpush.msra.mxu0 0.0
        %970 = vmatpush.msra.mxu0 0.0
        %971 = vmatpush.msra.mxu0 0.0
        %972 = vmatpush.msra.mxu0 0.0
        %973 = vmatpush.msra.mxu0 0.0
        %974 = vmatpush.msra.mxu0 0.0
        %975 = vmatpush.msra.mxu0 %v931
        %976 = vmatpush.msra.mxu0 %v927
        %977 = vmatpush.msra.mxu0 %v923
        %978 = vmatpush.msra.mxu0 %v919
        %979 = vmatmul.f32.gmra.mxu0 %v941
        %v980 = vpop.f32.mrf.mxu0
        %v981 = vadd.f32 %v939, %v980
        %982 = vdwg.mxu0
        %983 = vmatpush.msra.mxu0 0.0
        %984 = vmatpush.msra.mxu0 0.0
        %985 = vmatpush.msra.mxu0 0.0
        %986 = vmatpush.msra.mxu0 0.0
        %987 = vmatpush.msra.mxu0 0.0
        %988 = vmatpush.msra.mxu0 0.0
        %989 = vmatpush.msra.mxu0 0.0
        %990 = vmatpush.msra.mxu0 0.0
        %991 = vmatpush.msra.mxu0 0.0
        %992 = vmatpush.msra.mxu0 0.0
        %993 = vmatpush.msra.mxu0 0.0
        %994 = vmatpush.msra.mxu0 0.0
        %995 = vmatpush.msra.mxu0 %v932
        %996 = vmatpush.msra.mxu0 %v928
        %997 = vmatpush.msra.mxu0 %v924
        %998 = vmatpush.msra.mxu0 %v920
        %999 = vmatmul.f32.gmra.mxu0 %v941
        %v1000 = vpop.f32.mrf.mxu0
        %v1001 = vadd.f32 %v939, %v1000
        %1002 = vdwg.mxu0
        %1003 = vmatpush.msra.mxu0 0.0
        %1004 = vmatpush.msra.mxu0 0.0
        %1005 = vmatpush.msra.mxu0 0.0
        %1006 = vmatpush.msra.mxu0 0.0
        %1007 = vmatpush.msra.mxu0 0.0
        %1008 = vmatpush.msra.mxu0 0.0
        %1009 = vmatpush.msra.mxu0 0.0
        %1010 = vmatpush.msra.mxu0 0.0
        %1011 = vmatpush.msra.mxu0 0.0
        %1012 = vmatpush.msra.mxu0 0.0
        %1013 = vmatpush.msra.mxu0 0.0
        %1014 = vmatpush.msra.mxu0 0.0
        %1015 = vmatpush.msra.mxu0 %v933
        %1016 = vmatpush.msra.mxu0 %v929
        %1017 = vmatpush.msra.mxu0 %v925
        %1018 = vmatpush.msra.mxu0 %v921
        %1019 = vmatmul.f32.gmra.mxu0 %v941
        %v1020 = vpop.f32.mrf.mxu0
        %v1021 = vadd.f32 %v939, %v1020
        %1022 = vdwg.mxu0
        %v1027 = vrot.slane %v981, 7
        %v1028 = vrot.slane %v1001, 6
        %v1029 = vrot.slane %v1021, 5
        %vm1030 = vcmask 1040384
        %v1031 = vsel %vm1030, %v961, %v1027
        %vm1032 = vcmask 1042434
        %v1033 = vsel %vm1032, %v1028, %v1029
        %vm1034 = vcmask 1041408
        %v1035 = vsel %vm1034, %v1031, %v1033
        %v1037 = vlaneseq
        %vm1038 = vcmp.ge.s32.totalorder %v1037, 0
        %vm1039 = vcmp.lt.s32.totalorder %v1037, 512
        %vm1040 = vmand %vm1038, %vm1039
        %1041 = vst.msk [vmem:[%s352] sm:$0xf] %vm1040, %v1035
        %v1042 = vld [vmem:[%s317 + $0x10] sm:$0x77]
        %v1043 = vld [vmem:[%s317 + $0x18] sm:$0x77]
        %v1046 = vperm.slane %v1042, 0
        %v1047 = vperm.slane %v1042, 4
        %v1048 = vperm.slane %v1043, 0
        %v1049 = vperm.slane %v1043, 4
        %v1054 = vperm.slane %v1046, 0
        %v1055 = vperm.slane %v1047, 0
        %v1056 = vperm.slane %v1048, 0
        %v1057 = vperm.slane %v1049, 0
        %v1058 = vmul.f32 %v386, %v1054
        %v1059 = vmul.f32 %v386, %v1055
        %v1060 = vmul.f32 %v386, %v1056
        %v1061 = vmul.f32 %v386, %v1057
        %v1062 = vmul.f32 %v391, %v1054
        %v1063 = vmul.f32 %v391, %v1055
        %v1064 = vmul.f32 %v391, %v1056
        %v1065 = vmul.f32 %v391, %v1057
        %v1066 = vmul.f32 %v396, %v1054
        %v1067 = vmul.f32 %v396, %v1055
        %v1068 = vmul.f32 %v396, %v1056
        %v1069 = vmul.f32 %v396, %v1057
        %v1070 = vmul.f32 %v401, %v1054
        %v1071 = vmul.f32 %v401, %v1055
        %v1072 = vmul.f32 %v401, %v1056
        %v1073 = vmul.f32 %v401, %v1057
        %v1074 = vperm.slane %v1042, 1
        %v1075 = vperm.slane %v1042, 5
        %v1076 = vperm.slane %v1043, 1
        %v1077 = vperm.slane %v1043, 5
        %v1082 = vperm.slane %v1074, 1
        %v1083 = vperm.slane %v1075, 1
        %v1084 = vperm.slane %v1076, 1
        %v1085 = vperm.slane %v1077, 1
        %v1086 = vmul.f32 %v435, %v1082
        %v1087 = vmul.f32 %v435, %v1083
        %v1088 = vmul.f32 %v435, %v1084
        %v1089 = vmul.f32 %v435, %v1085
        %v1090 = vmul.f32 %v439, %v1082
        %v1091 = vmul.f32 %v439, %v1083
        %v1092 = vmul.f32 %v439, %v1084
        %v1093 = vmul.f32 %v439, %v1085
        %v1094 = vmul.f32 %v443, %v1082
        %v1095 = vmul.f32 %v443, %v1083
        %v1096 = vmul.f32 %v443, %v1084
        %v1097 = vmul.f32 %v443, %v1085
        %v1098 = vmul.f32 %v447, %v1082
        %v1099 = vmul.f32 %v447, %v1083
        %v1100 = vmul.f32 %v447, %v1084
        %v1101 = vmul.f32 %v447, %v1085
        %v1102 = vadd.f32 %v1058, %v1086
        %v1103 = vadd.f32 %v1059, %v1087
        %v1104 = vadd.f32 %v1060, %v1088
        %v1105 = vadd.f32 %v1061, %v1089
        %v1106 = vadd.f32 %v1062, %v1090
        %v1107 = vadd.f32 %v1063, %v1091
        %v1108 = vadd.f32 %v1064, %v1092
        %v1109 = vadd.f32 %v1065, %v1093
        %v1110 = vadd.f32 %v1066, %v1094
        %v1111 = vadd.f32 %v1067, %v1095
        %v1112 = vadd.f32 %v1068, %v1096
        %v1113 = vadd.f32 %v1069, %v1097
        %v1114 = vadd.f32 %v1070, %v1098
        %v1115 = vadd.f32 %v1071, %v1099
        %v1116 = vadd.f32 %v1072, %v1100
        %v1117 = vadd.f32 %v1073, %v1101
        %v1118 = vperm.slane %v1042, 2
        %v1119 = vperm.slane %v1042, 6
        %v1120 = vperm.slane %v1043, 2
        %v1121 = vperm.slane %v1043, 6
        %v1126 = vperm.slane %v1118, 2
        %v1127 = vperm.slane %v1119, 2
        %v1128 = vperm.slane %v1120, 2
        %v1129 = vperm.slane %v1121, 2
        %v1130 = vmul.f32 %v495, %v1126
        %v1131 = vmul.f32 %v495, %v1127
        %v1132 = vmul.f32 %v495, %v1128
        %v1133 = vmul.f32 %v495, %v1129
        %v1134 = vmul.f32 %v499, %v1126
        %v1135 = vmul.f32 %v499, %v1127
        %v1136 = vmul.f32 %v499, %v1128
        %v1137 = vmul.f32 %v499, %v1129
        %v1138 = vmul.f32 %v503, %v1126
        %v1139 = vmul.f32 %v503, %v1127
        %v1140 = vmul.f32 %v503, %v1128
        %v1141 = vmul.f32 %v503, %v1129
        %v1142 = vmul.f32 %v507, %v1126
        %v1143 = vmul.f32 %v507, %v1127
        %v1144 = vmul.f32 %v507, %v1128
        %v1145 = vmul.f32 %v507, %v1129
        %v1146 = vadd.f32 %v1102, %v1130
        %v1147 = vadd.f32 %v1103, %v1131
        %v1148 = vadd.f32 %v1104, %v1132
        %v1149 = vadd.f32 %v1105, %v1133
        %v1150 = vadd.f32 %v1106, %v1134
        %v1151 = vadd.f32 %v1107, %v1135
        %v1152 = vadd.f32 %v1108, %v1136
        %v1153 = vadd.f32 %v1109, %v1137
        %v1154 = vadd.f32 %v1110, %v1138
        %v1155 = vadd.f32 %v1111, %v1139
        %v1156 = vadd.f32 %v1112, %v1140
        %v1157 = vadd.f32 %v1113, %v1141
        %v1158 = vadd.f32 %v1114, %v1142
        %v1159 = vadd.f32 %v1115, %v1143
        %v1160 = vadd.f32 %v1116, %v1144
        %v1161 = vadd.f32 %v1117, %v1145
        %v1162 = vadd.f32 %v1146, %v556
        %v1163 = vadd.f32 %v1147, %v556
        %v1164 = vadd.f32 %v1148, %v556
        %v1165 = vadd.f32 %v1149, %v556
        %v1166 = vadd.f32 %v1150, %v561
        %v1167 = vadd.f32 %v1151, %v561
        %v1168 = vadd.f32 %v1152, %v561
        %v1169 = vadd.f32 %v1153, %v561
        %v1170 = vadd.f32 %v1154, %v566
        %v1171 = vadd.f32 %v1155, %v566
        %v1172 = vadd.f32 %v1156, %v566
        %v1173 = vadd.f32 %v1157, %v566
        %v1174 = vadd.f32 %v1158, %v571
        %v1175 = vadd.f32 %v1159, %v571
        %v1176 = vadd.f32 %v1160, %v571
        %v1177 = vadd.f32 %v1161, %v571
        %v1178 = vmax.f32 %v1162, 0.0
        %v1179 = vmax.f32 %v1163, 0.0
        %v1180 = vmax.f32 %v1164, 0.0
        %v1181 = vmax.f32 %v1165, 0.0
        %v1182 = vmax.f32 %v1166, 0.0
        %v1183 = vmax.f32 %v1167, 0.0
        %v1184 = vmax.f32 %v1168, 0.0
        %v1185 = vmax.f32 %v1169, 0.0
        %v1186 = vmax.f32 %v1170, 0.0
        %v1187 = vmax.f32 %v1171, 0.0
        %v1188 = vmax.f32 %v1172, 0.0
        %v1189 = vmax.f32 %v1173, 0.0
        %v1190 = vmax.f32 %v1174, 0.0
        %v1191 = vmax.f32 %v1175, 0.0
        %v1192 = vmax.f32 %v1176, 0.0
        %v1193 = vmax.f32 %v1177, 0.0
        %1194 = vmatpush.msra.mxu0 0.0
        %1195 = vmatpush.msra.mxu0 0.0
        %1196 = vmatpush.msra.mxu0 0.0
        %1197 = vmatpush.msra.mxu0 0.0
        %1198 = vmatpush.msra.mxu0 0.0
        %1199 = vmatpush.msra.mxu0 0.0
        %1200 = vmatpush.msra.mxu0 0.0
        %1201 = vmatpush.msra.mxu0 0.0
        %1202 = vmatpush.msra.mxu0 0.0
        %1203 = vmatpush.msra.mxu0 0.0
        %1204 = vmatpush.msra.mxu0 0.0
        %1205 = vmatpush.msra.mxu0 0.0
        %1206 = vmatpush.msra.mxu0 %v1190
        %1207 = vmatpush.msra.mxu0 %v1186
        %1208 = vmatpush.msra.mxu0 %v1182
        %1209 = vmatpush.msra.mxu0 %v1178
        %1210 = vmatmul.f32.gmra.mxu0 %v627
        %v1211 = vpop.f32.mrf.mxu0
        %v1212 = vadd.f32 %v608, %v1211
        %1213 = vmatmul.f32.gmra.mxu0 %v630
        %v1214 = vpop.f32.mrf.mxu0
        %v1215 = vadd.f32 %v613, %v1214
        %1216 = vmatmul.f32.gmra.mxu0 %v633
        %v1217 = vpop.f32.mrf.mxu0
        %v1218 = vadd.f32 %v618, %v1217
        %1219 = vmatmul.f32.gmra.mxu0 %v636
        %v1220 = vpop.f32.mrf.mxu0
        %v1221 = vadd.f32 %v623, %v1220
        %1222 = vdwg.mxu0
        %1223 = vmatpush.msra.mxu0 0.0
        %1224 = vmatpush.msra.mxu0 0.0
        %1225 = vmatpush.msra.mxu0 0.0
        %1226 = vmatpush.msra.mxu0 0.0
        %1227 = vmatpush.msra.mxu0 0.0
        %1228 = vmatpush.msra.mxu0 0.0
        %1229 = vmatpush.msra.mxu0 0.0
        %1230 = vmatpush.msra.mxu0 0.0
        %1231 = vmatpush.msra.mxu0 0.0
        %1232 = vmatpush.msra.mxu0 0.0
        %1233 = vmatpush.msra.mxu0 0.0
        %1234 = vmatpush.msra.mxu0 0.0
        %1235 = vmatpush.msra.mxu0 %v1191
        %1236 = vmatpush.msra.mxu0 %v1187
        %1237 = vmatpush.msra.mxu0 %v1183
        %1238 = vmatpush.msra.mxu0 %v1179
        %1239 = vmatmul.f32.gmra.mxu0 %v627
        %v1240 = vpop.f32.mrf.mxu0
        %v1241 = vadd.f32 %v608, %v1240
        %1242 = vmatmul.f32.gmra.mxu0 %v630
        %v1243 = vpop.f32.mrf.mxu0
        %v1244 = vadd.f32 %v613, %v1243
        %1245 = vmatmul.f32.gmra.mxu0 %v633
        %v1246 = vpop.f32.mrf.mxu0
        %v1247 = vadd.f32 %v618, %v1246
        %1248 = vmatmul.f32.gmra.mxu0 %v636
        %v1249 = vpop.f32.mrf.mxu0
        %v1250 = vadd.f32 %v623, %v1249
        %1251 = vdwg.mxu0
        %1252 = vmatpush.msra.mxu0 0.0
        %1253 = vmatpush.msra.mxu0 0.0
        %1254 = vmatpush.msra.mxu0 0.0
        %1255 = vmatpush.msra.mxu0 0.0
        %1256 = vmatpush.msra.mxu0 0.0
        %1257 = vmatpush.msra.mxu0 0.0
        %1258 = vmatpush.msra.mxu0 0.0
        %1259 = vmatpush.msra.mxu0 0.0
        %1260 = vmatpush.msra.mxu0 0.0
        %1261 = vmatpush.msra.mxu0 0.0
        %1262 = vmatpush.msra.mxu0 0.0
        %1263 = vmatpush.msra.mxu0 0.0
        %1264 = vmatpush.msra.mxu0 %v1192
        %1265 = vmatpush.msra.mxu0 %v1188
        %1266 = vmatpush.msra.mxu0 %v1184
        %1267 = vmatpush.msra.mxu0 %v1180
        %1268 = vmatmul.f32.gmra.mxu0 %v627
        %v1269 = vpop.f32.mrf.mxu0
        %v1270 = vadd.f32 %v608, %v1269
        %1271 = vmatmul.f32.gmra.mxu0 %v630
        %v1272 = vpop.f32.mrf.mxu0
        %v1273 = vadd.f32 %v613, %v1272
        %1274 = vmatmul.f32.gmra.mxu0 %v633
        %v1275 = vpop.f32.mrf.mxu0
        %v1276 = vadd.f32 %v618, %v1275
        %1277 = vmatmul.f32.gmra.mxu0 %v636
        %v1278 = vpop.f32.mrf.mxu0
        %v1279 = vadd.f32 %v623, %v1278
        %1280 = vdwg.mxu0
        %1281 = vmatpush.msra.mxu0 0.0
        %1282 = vmatpush.msra.mxu0 0.0
        %1283 = vmatpush.msra.mxu0 0.0
        %1284 = vmatpush.msra.mxu0 0.0
        %1285 = vmatpush.msra.mxu0 0.0
        %1286 = vmatpush.msra.mxu0 0.0
        %1287 = vmatpush.msra.mxu0 0.0
        %1288 = vmatpush.msra.mxu0 0.0
        %1289 = vmatpush.msra.mxu0 0.0
        %1290 = vmatpush.msra.mxu0 0.0
        %1291 = vmatpush.msra.mxu0 0.0
        %1292 = vmatpush.msra.mxu0 0.0
        %1293 = vmatpush.msra.mxu0 %v1193
        %1294 = vmatpush.msra.mxu0 %v1189
        %1295 = vmatpush.msra.mxu0 %v1185
        %1296 = vmatpush.msra.mxu0 %v1181
        %1297 = vmatmul.f32.gmra.mxu0 %v627
        %v1298 = vpop.f32.mrf.mxu0
        %v1299 = vadd.f32 %v608, %v1298
        %1300 = vmatmul.f32.gmra.mxu0 %v630
        %v1301 = vpop.f32.mrf.mxu0
        %v1302 = vadd.f32 %v613, %v1301
        %1303 = vmatmul.f32.gmra.mxu0 %v633
        %v1304 = vpop.f32.mrf.mxu0
        %v1305 = vadd.f32 %v618, %v1304
        %1306 = vmatmul.f32.gmra.mxu0 %v636
        %v1307 = vpop.f32.mrf.mxu0
        %v1308 = vadd.f32 %v623, %v1307
        %1309 = vdwg.mxu0
        %v1310 = vmax.f32 %v1212, 0.0
        %v1311 = vmax.f32 %v1241, 0.0
        %v1312 = vmax.f32 %v1270, 0.0
        %v1313 = vmax.f32 %v1299, 0.0
        %v1314 = vmax.f32 %v1215, 0.0
        %v1315 = vmax.f32 %v1244, 0.0
        %v1316 = vmax.f32 %v1273, 0.0
        %v1317 = vmax.f32 %v1302, 0.0
        %v1318 = vmax.f32 %v1218, 0.0
        %v1319 = vmax.f32 %v1247, 0.0
        %v1320 = vmax.f32 %v1276, 0.0
        %v1321 = vmax.f32 %v1305, 0.0
        %v1322 = vmax.f32 %v1221, 0.0
        %v1323 = vmax.f32 %v1250, 0.0
        %v1324 = vmax.f32 %v1279, 0.0
        %v1325 = vmax.f32 %v1308, 0.0
        %1326 = vmatpush.msra.mxu0 0.0
        %1327 = vmatpush.msra.mxu0 0.0
        %1328 = vmatpush.msra.mxu0 0.0
        %1329 = vmatpush.msra.mxu0 0.0
        %1330 = vmatpush.msra.mxu0 0.0
        %1331 = vmatpush.msra.mxu0 0.0
        %1332 = vmatpush.msra.mxu0 0.0
        %1333 = vmatpush.msra.mxu0 0.0
        %1334 = vmatpush.msra.mxu0 0.0
        %1335 = vmatpush.msra.mxu0 0.0
        %1336 = vmatpush.msra.mxu0 0.0
        %1337 = vmatpush.msra.mxu0 0.0
        %1338 = vmatpush.msra.mxu0 %v1322
        %1339 = vmatpush.msra.mxu0 %v1318
        %1340 = vmatpush.msra.mxu0 %v1314
        %1341 = vmatpush.msra.mxu0 %v1310
        %1342 = vmatmul.f32.gmra.mxu0 %v791
        %v1343 = vpop.f32.mrf.mxu0
        %v1344 = vadd.f32 %v773, %v1343
        %1345 = vmatmul.f32.gmra.mxu0 %v794
        %v1346 = vpop.f32.mrf.mxu0
        %v1347 = vadd.f32 %v778, %v1346
        %1348 = vmatmul.f32.gmra.mxu0 %v797
        %v1349 = vpop.f32.mrf.mxu0
        %v1350 = vadd.f32 %v783, %v1349
        %1351 = vmatmul.f32.gmra.mxu0 %v800
        %v1352 = vpop.f32.mrf.mxu0
        %v1353 = vadd.f32 %v788, %v1352
        %1354 = vdwg.mxu0
        %1355 = vmatpush.msra.mxu0 0.0
        %1356 = vmatpush.msra.mxu0 0.0
        %1357 = vmatpush.msra.mxu0 0.0
        %1358 = vmatpush.msra.mxu0 0.0
        %1359 = vmatpush.msra.mxu0 0.0
        %1360 = vmatpush.msra.mxu0 0.0
        %1361 = vmatpush.msra.mxu0 0.0
        %1362 = vmatpush.msra.mxu0 0.0
        %1363 = vmatpush.msra.mxu0 0.0
        %1364 = vmatpush.msra.mxu0 0.0
        %1365 = vmatpush.msra.mxu0 0.0
        %1366 = vmatpush.msra.mxu0 0.0
        %1367 = vmatpush.msra.mxu0 %v1323
        %1368 = vmatpush.msra.mxu0 %v1319
        %1369 = vmatpush.msra.mxu0 %v1315
        %1370 = vmatpush.msra.mxu0 %v1311
        %1371 = vmatmul.f32.gmra.mxu0 %v791
        %v1372 = vpop.f32.mrf.mxu0
        %v1373 = vadd.f32 %v773, %v1372
        %1374 = vmatmul.f32.gmra.mxu0 %v794
        %v1375 = vpop.f32.mrf.mxu0
        %v1376 = vadd.f32 %v778, %v1375
        %1377 = vmatmul.f32.gmra.mxu0 %v797
        %v1378 = vpop.f32.mrf.mxu0
        %v1379 = vadd.f32 %v783, %v1378
        %1380 = vmatmul.f32.gmra.mxu0 %v800
        %v1381 = vpop.f32.mrf.mxu0
        %v1382 = vadd.f32 %v788, %v1381
        %1383 = vdwg.mxu0
        %1384 = vmatpush.msra.mxu0 0.0
        %1385 = vmatpush.msra.mxu0 0.0
        %1386 = vmatpush.msra.mxu0 0.0
        %1387 = vmatpush.msra.mxu0 0.0
        %1388 = vmatpush.msra.mxu0 0.0
        %1389 = vmatpush.msra.mxu0 0.0
        %1390 = vmatpush.msra.mxu0 0.0
        %1391 = vmatpush.msra.mxu0 0.0
        %1392 = vmatpush.msra.mxu0 0.0
        %1393 = vmatpush.msra.mxu0 0.0
        %1394 = vmatpush.msra.mxu0 0.0
        %1395 = vmatpush.msra.mxu0 0.0
        %1396 = vmatpush.msra.mxu0 %v1324
        %1397 = vmatpush.msra.mxu0 %v1320
        %1398 = vmatpush.msra.mxu0 %v1316
        %1399 = vmatpush.msra.mxu0 %v1312
        %1400 = vmatmul.f32.gmra.mxu0 %v791
        %v1401 = vpop.f32.mrf.mxu0
        %v1402 = vadd.f32 %v773, %v1401
        %1403 = vmatmul.f32.gmra.mxu0 %v794
        %v1404 = vpop.f32.mrf.mxu0
        %v1405 = vadd.f32 %v778, %v1404
        %1406 = vmatmul.f32.gmra.mxu0 %v797
        %v1407 = vpop.f32.mrf.mxu0
        %v1408 = vadd.f32 %v783, %v1407
        %1409 = vmatmul.f32.gmra.mxu0 %v800
        %v1410 = vpop.f32.mrf.mxu0
        %v1411 = vadd.f32 %v788, %v1410
        %1412 = vdwg.mxu0
        %1413 = vmatpush.msra.mxu0 0.0
        %1414 = vmatpush.msra.mxu0 0.0
        %1415 = vmatpush.msra.mxu0 0.0
        %1416 = vmatpush.msra.mxu0 0.0
        %1417 = vmatpush.msra.mxu0 0.0
        %1418 = vmatpush.msra.mxu0 0.0
        %1419 = vmatpush.msra.mxu0 0.0
        %1420 = vmatpush.msra.mxu0 0.0
        %1421 = vmatpush.msra.mxu0 0.0
        %1422 = vmatpush.msra.mxu0 0.0
        %1423 = vmatpush.msra.mxu0 0.0
        %1424 = vmatpush.msra.mxu0 0.0
        %1425 = vmatpush.msra.mxu0 %v1325
        %1426 = vmatpush.msra.mxu0 %v1321
        %1427 = vmatpush.msra.mxu0 %v1317
        %1428 = vmatpush.msra.mxu0 %v1313
        %1429 = vmatmul.f32.gmra.mxu0 %v791
        %v1430 = vpop.f32.mrf.mxu0
        %v1431 = vadd.f32 %v773, %v1430
        %1432 = vmatmul.f32.gmra.mxu0 %v794
        %v1433 = vpop.f32.mrf.mxu0
        %v1434 = vadd.f32 %v778, %v1433
        %1435 = vmatmul.f32.gmra.mxu0 %v797
        %v1436 = vpop.f32.mrf.mxu0
        %v1437 = vadd.f32 %v783, %v1436
        %1438 = vmatmul.f32.gmra.mxu0 %v800
        %v1439 = vpop.f32.mrf.mxu0
        %v1440 = vadd.f32 %v788, %v1439
        %1441 = vdwg.mxu0
        %v1442 = vmax.f32 %v1344, 0.0
        %v1443 = vmax.f32 %v1373, 0.0
        %v1444 = vmax.f32 %v1402, 0.0
        %v1445 = vmax.f32 %v1431, 0.0
        %v1446 = vmax.f32 %v1347, 0.0
        %v1447 = vmax.f32 %v1376, 0.0
        %v1448 = vmax.f32 %v1405, 0.0
        %v1449 = vmax.f32 %v1434, 0.0
        %v1450 = vmax.f32 %v1350, 0.0
        %v1451 = vmax.f32 %v1379, 0.0
        %v1452 = vmax.f32 %v1408, 0.0
        %v1453 = vmax.f32 %v1437, 0.0
        %v1454 = vmax.f32 %v1353, 0.0
        %v1455 = vmax.f32 %v1382, 0.0
        %v1456 = vmax.f32 %v1411, 0.0
        %v1457 = vmax.f32 %v1440, 0.0
        %1458 = vmatpush.msra.mxu0 0.0
        %1459 = vmatpush.msra.mxu0 0.0
        %1460 = vmatpush.msra.mxu0 0.0
        %1461 = vmatpush.msra.mxu0 0.0
        %1462 = vmatpush.msra.mxu0 0.0
        %1463 = vmatpush.msra.mxu0 0.0
        %1464 = vmatpush.msra.mxu0 0.0
        %1465 = vmatpush.msra.mxu0 0.0
        %1466 = vmatpush.msra.mxu0 0.0
        %1467 = vmatpush.msra.mxu0 0.0
        %1468 = vmatpush.msra.mxu0 0.0
        %1469 = vmatpush.msra.mxu0 0.0
        %1470 = vmatpush.msra.mxu0 %v1454
        %1471 = vmatpush.msra.mxu0 %v1450
        %1472 = vmatpush.msra.mxu0 %v1446
        %1473 = vmatpush.msra.mxu0 %v1442
        %1474 = vmatmul.f32.gmra.mxu0 %v941
        %v1475 = vpop.f32.mrf.mxu0
        %v1476 = vadd.f32 %v939, %v1475
        %1477 = vdwg.mxu0
        %1478 = vmatpush.msra.mxu0 0.0
        %1479 = vmatpush.msra.mxu0 0.0
        %1480 = vmatpush.msra.mxu0 0.0
        %1481 = vmatpush.msra.mxu0 0.0
        %1482 = vmatpush.msra.mxu0 0.0
        %1483 = vmatpush.msra.mxu0 0.0
        %1484 = vmatpush.msra.mxu0 0.0
        %1485 = vmatpush.msra.mxu0 0.0
        %1486 = vmatpush.msra.mxu0 0.0
        %1487 = vmatpush.msra.mxu0 0.0
        %1488 = vmatpush.msra.mxu0 0.0
        %1489 = vmatpush.msra.mxu0 0.0
        %1490 = vmatpush.msra.mxu0 %v1455
        %1491 = vmatpush.msra.mxu0 %v1451
        %1492 = vmatpush.msra.mxu0 %v1447
        %1493 = vmatpush.msra.mxu0 %v1443
        %1494 = vmatmul.f32.gmra.mxu0 %v941
        %v1495 = vpop.f32.mrf.mxu0
        %v1496 = vadd.f32 %v939, %v1495
        %1497 = vdwg.mxu0
        %1498 = vmatpush.msra.mxu0 0.0
        %1499 = vmatpush.msra.mxu0 0.0
        %1500 = vmatpush.msra.mxu0 0.0
        %1501 = vmatpush.msra.mxu0 0.0
        %1502 = vmatpush.msra.mxu0 0.0
        %1503 = vmatpush.msra.mxu0 0.0
        %1504 = vmatpush.msra.mxu0 0.0
        %1505 = vmatpush.msra.mxu0 0.0
        %1506 = vmatpush.msra.mxu0 0.0
        %1507 = vmatpush.msra.mxu0 0.0
        %1508 = vmatpush.msra.mxu0 0.0
        %1509 = vmatpush.msra.mxu0 0.0
        %1510 = vmatpush.msra.mxu0 %v1456
        %1511 = vmatpush.msra.mxu0 %v1452
        %1512 = vmatpush.msra.mxu0 %v1448
        %1513 = vmatpush.msra.mxu0 %v1444
        %1514 = vmatmul.f32.gmra.mxu0 %v941
        %v1515 = vpop.f32.mrf.mxu0
        %v1516 = vadd.f32 %v939, %v1515
        %1517 = vdwg.mxu0
        %1518 = vmatpush.msra.mxu0 0.0
        %1519 = vmatpush.msra.mxu0 0.0
        %1520 = vmatpush.msra.mxu0 0.0
        %1521 = vmatpush.msra.mxu0 0.0
        %1522 = vmatpush.msra.mxu0 0.0
        %1523 = vmatpush.msra.mxu0 0.0
        %1524 = vmatpush.msra.mxu0 0.0
        %1525 = vmatpush.msra.mxu0 0.0
        %1526 = vmatpush.msra.mxu0 0.0
        %1527 = vmatpush.msra.mxu0 0.0
        %1528 = vmatpush.msra.mxu0 0.0
        %1529 = vmatpush.msra.mxu0 0.0
        %1530 = vmatpush.msra.mxu0 %v1457
        %1531 = vmatpush.msra.mxu0 %v1453
        %1532 = vmatpush.msra.mxu0 %v1449
        %1533 = vmatpush.msra.mxu0 %v1445
        %1534 = vmatmul.f32.gmra.mxu0 %v941
        %v1535 = vpop.f32.mrf.mxu0
        %v1536 = vadd.f32 %v939, %v1535
        %1537 = vdwg.mxu0
        %v1542 = vrot.slane %v1496, 7
        %v1543 = vrot.slane %v1516, 6
        %v1544 = vrot.slane %v1536, 5
        %v1545 = vsel %vm1030, %v1476, %v1542
        %v1546 = vsel %vm1032, %v1543, %v1544
        %v1547 = vsel %vm1034, %v1545, %v1546
        %1549 = vst.msk [vmem:[%s352 + $0x4] sm:$0xf] %vm1040, %v1547
        %s1550 = sand.u32 %s230, 1
        %s1551 = scalar_lea.sflag [#allocation5], %s1550
        %s1552 = sand.u32 %s230, 1
        %s1553 = smul.addr %s1552, 8
        %s1554 = scalar_lea.vmem [#allocation6], %s1553
        // Predicated region
        $region61: #{tpu_custom_call.1} parent=55 // pred_check
          %p1555 = pneg %p240
        $region62: #{tpu_custom_call.1} parent=55 // pred_check_branch
          %1557 = sbr.rel (%p1555) target = $region64
        $region63: #{tpu_custom_call.1} parent=55 // pred_region
          %s1558 = smul.u32 8, %s28
          %1560 = vsyncadd %s1551, 0
          %s1561 = scalar_lea.hbm %s9, %s1558
          %s1563 = sshll.u32 %s1554, 4
          %s1564 = int_to_ptr.vmem [resolvable:$true] %s1563
          %s1565 = sshll.u32 %s1561, 4
          %s1566 = int_to_ptr.hbm [resolvable:$true] %s1565
          %1568 = dma.vmem_to_hbm [thread:$0]  %s1564, 128, %s1566, %s1551
        $region64: #{tpu_custom_call.1} parent=55 // pred_fallthru
          _
      $region56: #{tpu_custom_call.1} parent=5 // pred_fallthru
        _
      %p1569 = scmp.le.s32.totalorder 2, %s23
      // Predicated region
      $region65: #{tpu_custom_call.1} parent=5 // pred_check
        %p1570 = pneg %p1569
      $region66: #{tpu_custom_call.1} parent=5 // pred_check_branch
        %1572 = sbr.rel (%p1570) target = $region68
      $region67: #{tpu_custom_call.1} parent=5 // pred_region
        %s1573 = ssub.s32 %s23, 2
        // Predicated region
        $region69: #{tpu_custom_call.1} parent=67 // pred_check
          %p1574 = pneg %p246
        $region70: #{tpu_custom_call.1} parent=67 // pred_check_branch
          %1576 = sbr.rel (%p1574) target = $region72
        $region71: #{tpu_custom_call.1} parent=67 // pred_region
          %s1577 = sand.u32 %s231, 1
          %s1578 = scalar_lea.sflag [#allocation5], %s1577
          %s1579 = sand.u32 %s231, 1
          %s1580 = smul.addr %s1579, 8
          %s1581 = scalar_lea.vmem [#allocation6], %s1580
          %1583 = dma.done %s1578, 128
        $region72: #{tpu_custom_call.1} parent=67 // pred_fallthru
          _
      $region68: #{tpu_custom_call.1} parent=5 // pred_fallthru
        _
    $region6: #{tpu_custom_call.1} parent=1 // loop_footer
      %s27 = sadd.s32 1, %s23
    $region7: #{tpu_custom_call.1} parent=1 // loop_footer_branch
      %22 = sbr.rel target = $region3
    $region8: #{tpu_custom_call.1} parent=1 // loop_exit
      _
    %1584 = vsyncpa [#allocation4], 1
    %s1585 = scalar_lea.sflag [#allocation4], 1
    %1586 = vsyncpa %s1585, 1
    %1587 = vsyncpa [#allocation5], 1
    %s1588 = scalar_lea.sflag [#allocation5], 1
    %1589 = vsyncpa %s1588, 1

</llo_original>
